<compile_context>
chip_gen: v6e
topology: v6e:2x2x1
jax: 0.10.0
libtpu: 0.0.40
codegen_flags: <defaults>
</compile_context>

<pallas_src>
import functools

import jax
import jax.numpy as jnp
from jax.experimental import pallas as pl
from jax.experimental.pallas import tpu as pltpu

LANE = 128


def _round_up(v, m):
    return (v + m - 1) // m * m


def _vmem_capacity_bytes():
    try:
        return int(pltpu.get_tpu_info().vmem_capacity_bytes)
    except Exception:
        return 64 * 2**20           # conservative fallback (v7x-sized)


# ----------------------------- Pallas kernel ------------------------------

def _multiplex_gnn_kernel(a_ref, x_ref, w_ref, b_ref, wo_ref, o_ref, *,
                          num_layers, layer_dims):
    """Fused multiplex-GCN forward for one graph type (grid axis 0 = graph type)."""
    a = a_ref[...]                       # [Npad, Npad] bf16 (normalized adjacency)
    h = x_ref[...]                       # [Npad, Fpad] f32  (node features, resident)
    b_all = b_ref[...]                   # [L, Fpad]    f32

    for l in range(num_layers):
        w = w_ref[l]                     # [Fpad, Fpad] bf16
        b = b_all[l:l + 1, :]            # [1, Fpad]    f32
        h_bf = h.astype(jnp.bfloat16)    # one bf16 cast per layer, fed to both dots
        fin, fout = layer_dims[l]
        if fin < fout:
            # Expanding layer: (A @ H) @ W keeps the N^2-side matmul at width fin.
            ah = jnp.dot(a, h_bf, preferred_element_type=jnp.float32)
            h = jnp.dot(ah.astype(jnp.bfloat16), w,
                        preferred_element_type=jnp.float32) + b
        else:
            hw = jnp.dot(h_bf, w, preferred_element_type=jnp.float32)
            h = jnp.dot(a, hw.astype(jnp.bfloat16),
                        preferred_element_type=jnp.float32) + b
        if l < num_layers - 1:
            h = jnp.maximum(h, 0.0)      # f32 VPU ReLU (dropout p=0.0 -> identity)

    # Fused concat + output Linear: this graph type's slab of the output matmul.
    # Sum over graph types + bias add are done outside so the grid axis stays "parallel".
    o_ref[...] = jnp.dot(h.astype(jnp.bfloat16), wo_ref[...],
                         preferred_element_type=jnp.float32)


# ------------------------------ packing ------------------------------------
# Hoisted out of the forward: call once per graph set / parameter set.

def pack_graph(x, adjs, *, npad, fpad):
    """x: [N, in_ch] f32; adjs: list of [N, N] f32 -> (xp [Npad,Fpad] f32, a [T,Npad,Npad] bf16)."""
    n, in_ch = x.shape
    xp = jnp.pad(x, ((0, npad - n), (0, fpad - in_ch)))
    a = jnp.stack([jnp.pad(adj.astype(jnp.bfloat16),
                           ((0, npad - n), (0, npad - n))) for adj in adjs])
    return xp, a


def pack_params(params, *, num_layers, num_graph_types, fpad, opad, out_ch):
    """Zero-pad and stack per-type/per-layer weights.  W / W_out packed in bf16."""
    w = jnp.stack([
        jnp.stack([
            jnp.pad(wl.astype(jnp.bfloat16),
                    ((0, fpad - wl.shape[0]), (0, fpad - wl.shape[1])))
            for wl, _ in params["gnn"][t]])
        for t in range(num_graph_types)])                        # [T, L, Fpad, Fpad] bf16
    b = jnp.stack([
        jnp.stack([jnp.pad(bl, (0, fpad - bl.shape[0]))
                   for _, bl in params["gnn"][t]])
        for t in range(num_graph_types)])                        # [T, L, Fpad]       f32
    # Output Linear split per graph type: concat-then-matmul == sum_t h_t @ W_out_t.
    wo = jnp.stack([
        jnp.pad(params["out_w"][t * out_ch:(t + 1) * out_ch, :].astype(jnp.bfloat16),
                ((0, fpad - out_ch), (0, opad - out_ch)))
        for t in range(num_graph_types)])                        # [T, Fpad, opad]    bf16
    return w, b, wo


# ------------------------------- wrapper -----------------------------------

def multiplex_gnn_forward(xp, a, w, b, wo, out_b, *, n, out_ch, num_layers, layer_dims):
    """Run the fused kernel on pre-packed operands and return [n, out_ch] f32."""
    num_types, npad, _ = a.shape
    fpad = xp.shape[1]
    opad = wo.shape[2]

    # --- generation-gated VMEM budget (85% of physical per-TC VMEM). -------------------
    cap = int(0.85 * _vmem_capacity_bytes())

    a_blk = npad * npad * 2                       # bf16 A per grid step
    w_blk = num_layers * fpad * fpad * 2          # bf16 W (all layers)
    b_blk = num_layers * fpad * 4
    wo_blk = fpad * opad * 2
    o_blk = npad * opad * 4
    x_res = 2 * npad * fpad * 4                   # resident x (allow 2 bufs)
    interm = 4 * npad * fpad * 4 + npad * opad * 4  # h, ah/hw, bf16 copies, out temp

    def _total(a_bufs):
        return (a_bufs * a_blk + 2 * (w_blk + b_blk + wo_blk + o_blk)
                + x_res + interm)

    a_buffers = 2
    if _total(2) > cap:
        a_buffers = 1          # single-buffer the dominant A operand (v7x stopgap)
    need = _total(a_buffers)
    vmem_limit = int(min(max(need + (2 << 20), 16 * 2**20), cap))

    if a_buffers == 1:
        a_spec = pl.BlockSpec((None, npad, npad), lambda t: (t, 0, 0),
                              pipeline_mode=pl.Buffered(1))
    else:
        a_spec = pl.BlockSpec((None, npad, npad), lambda t: (t, 0, 0))

    kern = functools.partial(_multiplex_gnn_kernel,
                             num_layers=num_layers, layer_dims=layer_dims)

    out_slabs = pl.pallas_call(
        kern,
        out_shape=jax.ShapeDtypeStruct((num_types, npad, opad), jnp.float32),
        grid_spec=pltpu.PrefetchScalarGridSpec(
            num_scalar_prefetch=0,
            grid=(num_types,),
            in_specs=[
                a_spec,                                                        # A_hat_t
                pl.BlockSpec((npad, fpad), lambda t: (0, 0)),                  # x (resident)
                pl.BlockSpec((None, num_layers, fpad, fpad),
                             lambda t: (t, 0, 0, 0)),                          # W_t (all layers)
                pl.BlockSpec((None, num_layers, fpad), lambda t: (t, 0, 0)),   # b_t (all layers)
                pl.BlockSpec((None, fpad, opad), lambda t: (t, 0, 0)),         # W_out slice t
            ],
            out_specs=pl.BlockSpec((None, npad, opad), lambda t: (t, 0, 0)),   # per-type slab
        ),
        compiler_params=pltpu.CompilerParams(
            dimension_semantics=("parallel",),   # graph types independent -> megacore on v7x
            vmem_limit_bytes=vmem_limit,
        ),
    )(a, xp, w, b, wo)

    # Tiny XLA epilogue: sum over graph types (== concat-then-matmul), add bias, unpad.
    return out_slabs.sum(axis=0)[:n, :out_ch] + out_b[None, :]


# ------------------------------- JAX glue ----------------------------------

def normalized_adjacency(edge_index, num_nodes):
    """GCN symmetric normalization with added self loops (dense).

    Duplicate edges accumulate via .add, matching PyG gcn_norm on a non-coalesced
    edge_index.
    """
    src, dst = edge_index[0], edge_index[1]
    a = jnp.zeros((num_nodes, num_nodes), jnp.float32)
    a = a.at[dst, src].add(1.0)                       # message src -> dst
    a = a + jnp.eye(num_nodes, dtype=jnp.float32)     # self loops
    deg = a.sum(axis=1)
    dinv = jnp.where(deg > 0, jax.lax.rsqrt(deg), 0.0)
    return dinv[:, None] * a * dinv[None, :]


def init_params(key, in_ch, hid_ch, out_ch, num_layers, num_graph_types):
    """Deterministic (glorot-ish) initialization matching the module's shapes."""
    params = {"gnn": [], "out_w": None, "out_b": None}
    dims = [in_ch] + [hid_ch] * (num_layers - 1) + [out_ch]
    for _ in range(num_graph_types):
        layers = []
        for l in range(num_layers):
            key, kw = jax.random.split(key)
            fin, fout = dims[l], dims[l + 1]
            scale = jnp.sqrt(2.0 / (fin + fout))
            wl = scale * jax.random.normal(kw, (fin, fout), jnp.float32)
            bl = jnp.zeros((fout,), jnp.float32)   # GCNConv bias default init = zeros
            layers.append((wl, bl))
        params["gnn"].append(layers)
    key, kw, kb = jax.random.split(key, 3)
    concat_dim = out_ch * num_graph_types
    bound = 1.0 / jnp.sqrt(concat_dim)
    # nn.Linear weight is [out, in]; store transposed as [in, out] for the kernel.
    params["out_w"] = jax.random.uniform(
        kw, (concat_dim, out_ch), jnp.float32, -bound, bound)
    params["out_b"] = jax.random.uniform(kb, (out_ch,), jnp.float32, -bound, bound)
    return params


def multiplex_gnn_reference(x, adjs, params, num_layers):
    """Pure-JAX f32 reference of the PyTorch forward (for a tolerance check)."""
    embs = []
    for t, a_hat in enumerate(adjs):
        h = x
        for l, (wl, bl) in enumerate(params["gnn"][t]):
            h = a_hat @ (h @ wl) + bl[None, :]
            if l < num_layers - 1:
                h = jax.nn.relu(h)
        embs.append(h)
    combined = jnp.concatenate(embs, axis=1)
    return combined @ params["out_w"] + params["out_b"][None, :]


# --------------------------------- main -------------------------------------

if __name__ == "__main__":
    # Small, module-consistent shapes.
    N = 16                # number of graph nodes
    IN_CH = 8
    HID_CH = 32
    OUT_CH = 16
    NUM_LAYERS = 3
    NUM_GRAPH_TYPES = 2
    NUM_EDGES = 32

    key = jax.random.PRNGKey(0)
    key, kx = jax.random.split(key)
    x = jax.random.normal(kx, (N, IN_CH), jnp.float32)

    edge_indices = []
    for _ in range(NUM_GRAPH_TYPES):
        key, ke = jax.random.split(key)
        edge_indices.append(
            jax.random.randint(ke, (2, NUM_EDGES), 0, N, dtype=jnp.int32))

    adjs = [normalized_adjacency(ei, N) for ei in edge_indices]

    key, kp = jax.random.split(key)
    params = init_params(kp, IN_CH, HID_CH, OUT_CH, NUM_LAYERS, NUM_GRAPH_TYPES)

    # Padded geometry.
    dims = [IN_CH] + [HID_CH] * (NUM_LAYERS - 1) + [OUT_CH]
    layer_dims = tuple((dims[l], dims[l + 1]) for l in range(NUM_LAYERS))
    fpad = _round_up(max(dims), LANE)
    opad = _round_up(OUT_CH, LANE)
    npad = _round_up(N, LANE)

    # Pack ONCE per parameter set / graph set (not per forward call).
    w, b, wo = pack_params(params, num_layers=NUM_LAYERS,
                           num_graph_types=NUM_GRAPH_TYPES,
                           fpad=fpad, opad=opad, out_ch=OUT_CH)
    xp, a = pack_graph(x, adjs, npad=npad, fpad=fpad)

    out = multiplex_gnn_forward(xp, a, w, b, wo, params["out_b"],
                                n=N, out_ch=OUT_CH, num_layers=NUM_LAYERS,
                                layer_dims=layer_dims)
    out = jax.block_until_ready(out)
    assert out.shape == (N, OUT_CH), out.shape

    # Correctness vs f32 reference (loose tolerance: all MXU operands are bf16).
    ref = multiplex_gnn_reference(x, adjs, params, NUM_LAYERS)
    err = float(jnp.max(jnp.abs(out - ref)))
    scale = float(jnp.max(jnp.abs(ref))) + 1e-6
    assert err <= 5e-2 * scale + 5e-3, (err, scale)

    print("KERNEL_OK")
</pallas_src>

<mosaic_0001>
module attributes {stable_mosaic.version = 11 : i64} {
  func.func @_multiplex_gnn_kernel(%arg0: i32, %arg1: memref<1x128x128xbf16, #tpu.memory_space<vmem>>, %arg2: memref<128x128xf32, #tpu.memory_space<vmem>>, %arg3: memref<1x3x128x128xbf16, #tpu.memory_space<vmem>>, %arg4: memref<1x3x128xf32, #tpu.memory_space<vmem>>, %arg5: memref<1x128x128xbf16, #tpu.memory_space<vmem>>, %arg6: memref<1x128x128xf32, #tpu.memory_space<vmem>>) attributes {dimension_semantics = [#tpu.dimension_semantics<parallel>], iteration_bounds = array<i64: 2>, scalar_prefetch = 0 : i64, scratch_operands = 0 : i64, tpu.core_type = #tpu.core_type<tc>, window_params = [{transform_indices = @transform_0, window_bounds = array<i64: 1, 128, 128>}, {pipeline_mode = #tpu.pipeline_mode<synchronous>, transform_indices = @transform_1, window_bounds = array<i64: 128, 128>}, {transform_indices = @transform_2, window_bounds = array<i64: 1, 3, 128, 128>}, {transform_indices = @transform_3, window_bounds = array<i64: 1, 3, 128>}, {transform_indices = @transform_4, window_bounds = array<i64: 1, 128, 128>}, {transform_indices = @transform_5, window_bounds = array<i64: 1, 128, 128>}]} {
    %c0 = arith.constant 0 : index
    %c0_0 = arith.constant 0 : index
    %c0_1 = arith.constant 0 : index
    %0 = vector.load %arg1[%c0, %c0_0, %c0_1] : memref<1x128x128xbf16, #tpu.memory_space<vmem>>, vector<1x128x128xbf16>
    %1 = vector.shape_cast %0 : vector<1x128x128xbf16> to vector<128x128xbf16>
    %c0_2 = arith.constant 0 : index
    %c0_3 = arith.constant 0 : index
    %2 = vector.load %arg2[%c0_2, %c0_3] : memref<128x128xf32, #tpu.memory_space<vmem>>, vector<128x128xf32>
    %c0_4 = arith.constant 0 : index
    %c0_5 = arith.constant 0 : index
    %c0_6 = arith.constant 0 : index
    %3 = vector.load %arg4[%c0_4, %c0_5, %c0_6] : memref<1x3x128xf32, #tpu.memory_space<vmem>>, vector<1x3x128xf32>
    %4 = vector.shape_cast %3 : vector<1x3x128xf32> to vector<3x128xf32>
    %c0_7 = arith.constant 0 : index
    %c0_8 = arith.constant 0 : index
    %c0_9 = arith.constant 0 : index
    %c0_10 = arith.constant 0 : index
    %5 = vector.load %arg3[%c0_7, %c0_8, %c0_9, %c0_10] : memref<1x3x128x128xbf16, #tpu.memory_space<vmem>>, vector<1x1x128x128xbf16>
    %6 = vector.shape_cast %5 : vector<1x1x128x128xbf16> to vector<128x128xbf16>
    %7 = vector.extract_strided_slice %4 {offsets = [0, 0], sizes = [1, 128], strides = [1, 1]} : vector<3x128xf32> to vector<1x128xf32>
    %8 = arith.truncf %2 : vector<128x128xf32> to vector<128x128xbf16>
    %cst = arith.constant dense<0.000000e+00> : vector<128x128xf32>
    %9 = tpu.matmul %1, %8, %cst {dimension_numbers = #tpu.dot_dimension_numbers<[1], [0], [0], [1], [0, 0, 1, 1], [], []>} : vector<128x128xbf16>, vector<128x128xbf16>, vector<128x128xf32> -> vector<128x128xf32>
    %10 = arith.truncf %9 : vector<128x128xf32> to vector<128x128xbf16>
    %cst_11 = arith.constant dense<0.000000e+00> : vector<128x128xf32>
    %11 = tpu.matmul %10, %6, %cst_11 {dimension_numbers = #tpu.dot_dimension_numbers<[1], [0], [0], [1], [0, 0, 1, 1], [], []>} : vector<128x128xbf16>, vector<128x128xbf16>, vector<128x128xf32> -> vector<128x128xf32>
    %12 = vector.broadcast %7 : vector<1x128xf32> to vector<128x128xf32>
    %13 = arith.addf %11, %12 : vector<128x128xf32>
    %cst_12 = arith.constant 0.000000e+00 : f32
    %14 = vector.broadcast %cst_12 : f32 to vector<128x128xf32>
    %15 = arith.maximumf %13, %14 : vector<128x128xf32>
    %c0_13 = arith.constant 0 : index
    %c1 = arith.constant 1 : index
    %c0_14 = arith.constant 0 : index
    %c0_15 = arith.constant 0 : index
    %16 = vector.load %arg3[%c0_13, %c1, %c0_14, %c0_15] : memref<1x3x128x128xbf16, #tpu.memory_space<vmem>>, vector<1x1x128x128xbf16>
    %17 = vector.shape_cast %16 : vector<1x1x128x128xbf16> to vector<128x128xbf16>
    %18 = vector.extract_strided_slice %4 {offsets = [1, 0], sizes = [1, 128], strides = [1, 1]} : vector<3x128xf32> to vector<1x128xf32>
    %19 = arith.truncf %15 : vector<128x128xf32> to vector<128x128xbf16>
    %cst_16 = arith.constant dense<0.000000e+00> : vector<128x128xf32>
    %20 = tpu.matmul %19, %17, %cst_16 {dimension_numbers = #tpu.dot_dimension_numbers<[1], [0], [0], [1], [0, 0, 1, 1], [], []>} : vector<128x128xbf16>, vector<128x128xbf16>, vector<128x128xf32> -> vector<128x128xf32>
    %21 = arith.truncf %20 : vector<128x128xf32> to vector<128x128xbf16>
    %cst_17 = arith.constant dense<0.000000e+00> : vector<128x128xf32>
    %22 = tpu.matmul %1, %21, %cst_17 {dimension_numbers = #tpu.dot_dimension_numbers<[1], [0], [0], [1], [0, 0, 1, 1], [], []>} : vector<128x128xbf16>, vector<128x128xbf16>, vector<128x128xf32> -> vector<128x128xf32>
    %23 = vector.broadcast %18 : vector<1x128xf32> to vector<128x128xf32>
    %24 = arith.addf %22, %23 : vector<128x128xf32>
    %cst_18 = arith.constant 0.000000e+00 : f32
    %25 = vector.broadcast %cst_18 : f32 to vector<128x128xf32>
    %26 = arith.maximumf %24, %25 : vector<128x128xf32>
    %c0_19 = arith.constant 0 : index
    %c2 = arith.constant 2 : index
    %c0_20 = arith.constant 0 : index
    %c0_21 = arith.constant 0 : index
    %27 = vector.load %arg3[%c0_19, %c2, %c0_20, %c0_21] : memref<1x3x128x128xbf16, #tpu.memory_space<vmem>>, vector<1x1x128x128xbf16>
    %28 = vector.shape_cast %27 : vector<1x1x128x128xbf16> to vector<128x128xbf16>
    %29 = vector.extract_strided_slice %4 {offsets = [2, 0], sizes = [1, 128], strides = [1, 1]} : vector<3x128xf32> to vector<1x128xf32>
    %30 = arith.truncf %26 : vector<128x128xf32> to vector<128x128xbf16>
    %cst_22 = arith.constant dense<0.000000e+00> : vector<128x128xf32>
    %31 = tpu.matmul %30, %28, %cst_22 {dimension_numbers = #tpu.dot_dimension_numbers<[1], [0], [0], [1], [0, 0, 1, 1], [], []>} : vector<128x128xbf16>, vector<128x128xbf16>, vector<128x128xf32> -> vector<128x128xf32>
    %32 = arith.truncf %31 : vector<128x128xf32> to vector<128x128xbf16>
    %cst_23 = arith.constant dense<0.000000e+00> : vector<128x128xf32>
    %33 = tpu.matmul %1, %32, %cst_23 {dimension_numbers = #tpu.dot_dimension_numbers<[1], [0], [0], [1], [0, 0, 1, 1], [], []>} : vector<128x128xbf16>, vector<128x128xbf16>, vector<128x128xf32> -> vector<128x128xf32>
    %34 = vector.broadcast %29 : vector<1x128xf32> to vector<128x128xf32>
    %35 = arith.addf %33, %34 : vector<128x128xf32>
    %36 = arith.truncf %35 : vector<128x128xf32> to vector<128x128xbf16>
    %c0_24 = arith.constant 0 : index
    %c0_25 = arith.constant 0 : index
    %c0_26 = arith.constant 0 : index
    %37 = vector.load %arg5[%c0_24, %c0_25, %c0_26] : memref<1x128x128xbf16, #tpu.memory_space<vmem>>, vector<1x128x128xbf16>
    %38 = vector.shape_cast %37 : vector<1x128x128xbf16> to vector<128x128xbf16>
    %cst_27 = arith.constant dense<0.000000e+00> : vector<128x128xf32>
    %39 = tpu.matmul %36, %38, %cst_27 {dimension_numbers = #tpu.dot_dimension_numbers<[1], [0], [0], [1], [0, 0, 1, 1], [], []>} : vector<128x128xbf16>, vector<128x128xbf16>, vector<128x128xf32> -> vector<128x128xf32>
    %c0_28 = arith.constant 0 : index
    %c0_29 = arith.constant 0 : index
    %c0_30 = arith.constant 0 : index
    %40 = vector.load %arg6[%c0_28, %c0_29, %c0_30] : memref<1x128x128xf32, #tpu.memory_space<vmem>>, vector<1x128x128xf32>
    %41 = vector.shape_cast %40 : vector<1x128x128xf32> to vector<128x128xf32>
    %42 = vector.shape_cast %39 : vector<128x128xf32> to vector<1x128x128xf32>
    tpu.vector_store %arg6[%c0_28, %c0_29, %c0_30], %42 {strides = array<i32>} : memref<1x128x128xf32, #tpu.memory_space<vmem>>, vector<1x128x128xf32>,
    return
  }
  func.func @transform_0(%arg0: i32) -> (i32, i32, i32) {
    %c0_i32 = arith.constant 0 : i32
    %c0_i32_0 = arith.constant 0 : i32
    %c0_i32_1 = arith.constant 0 : i32
    return %arg0, %c0_i32, %c0_i32_0 : i32, i32, i32
  }
  func.func @transform_1(%arg0: i32) -> (i32, i32) {
    %c0_i32 = arith.constant 0 : i32
    %c0_i32_0 = arith.constant 0 : i32
    %c0_i32_1 = arith.constant 0 : i32
    return %c0_i32, %c0_i32_0 : i32, i32
  }
  func.func @transform_2(%arg0: i32) -> (i32, i32, i32, i32) {
    %c0_i32 = arith.constant 0 : i32
    %c0_i32_0 = arith.constant 0 : i32
    %c0_i32_1 = arith.constant 0 : i32
    %c0_i32_2 = arith.constant 0 : i32
    return %arg0, %c0_i32, %c0_i32_0, %c0_i32_1 : i32, i32, i32, i32
  }
  func.func @transform_3(%arg0: i32) -> (i32, i32, i32) {
    %c0_i32 = arith.constant 0 : i32
    %c0_i32_0 = arith.constant 0 : i32
    %c0_i32_1 = arith.constant 0 : i32
    return %arg0, %c0_i32, %c0_i32_0 : i32, i32, i32
  }
  func.func @transform_4(%arg0: i32) -> (i32, i32, i32) {
    %c0_i32 = arith.constant 0 : i32
    %c0_i32_0 = arith.constant 0 : i32
    %c0_i32_1 = arith.constant 0 : i32
    return %arg0, %c0_i32, %c0_i32_0 : i32, i32, i32
  }
  func.func @transform_5(%arg0: i32) -> (i32, i32, i32) {
    %c0_i32 = arith.constant 0 : i32
    %c0_i32_0 = arith.constant 0 : i32
    %c0_i32_1 = arith.constant 0 : i32
    return %arg0, %c0_i32, %c0_i32_0 : i32, i32, i32
  }
}

</mosaic_0001>

<llo_original>
// kernel: tpu_custom_call.1
$region0: #{tpu_custom_call.1}
  #allocation0 [shape = 'u32[]', space=smem, size = 0x4, offset = 0x4, fixed_abs, tag = 'smem constant byte address 0x4 - core index']
  #allocation1 [shape = 'u32[144,128]{1,0:T(1,128)}', space=vmem, size = 0x12000, scoped, tag = 'internal scratch']
  %s0 = inlined_call_operand.hbm [shape: bf16[2,128,128], index: 0, kind: input, shape index: {}]
  %s1 = inlined_call_operand.hbm [shape: f32[128,128], index: 1, kind: input, shape index: {}]
  %s2 = inlined_call_operand.hbm [shape: bf16[2,3,128,128], index: 2, kind: input, shape index: {}]
  %s3 = inlined_call_operand.vmem [shape: f32[2,3,128], index: 3, kind: input, shape index: {}]
  %s4 = inlined_call_operand.hbm [shape: bf16[2,128,128], index: 4, kind: input, shape index: {}]
  %s5 = inlined_call_operand.hbm [shape: f32[2,128,128], index: 5, kind: output, shape index: {}]
  %s6 = sld [smem:[#allocation0]]
  $region69: #{tpu_custom_call.1} parent=0
    _
  %s8 = ssub.s32 1, %s6
  %s9 = scalar_select 0, %s8, %s6
  $region1: #{tpu_custom_call.1} parent=0
    #allocation2 [shape = 'u8[65536]{0}', space=vmem, size = 0x10000, scoped, tag = 'input window, operand 0']
    #allocation3 [shape = 's32[2]{0}', space=sflag, size = 0x8, scoped, tag = 'scoped memory for tpu_custom_call.1']
    #allocation4 [shape = 's32[2]{0}', space=sflag, size = 0x8, scoped, tag = 'scoped memory for tpu_custom_call.1']
    #allocation5 [shape = 'u8[65536]{0}', space=vmem, size = 0x10000, scoped, tag = 'input window, operand 1, single buffered']
    #allocation6 [shape = 's32[1]{0}', space=sflag, size = 0x4, scoped, tag = 'scoped memory for tpu_custom_call.1']
    #allocation7 [shape = 'u8[196608]{0}', space=vmem, size = 0x30000, scoped, tag = 'input window, operand 2']
    #allocation8 [shape = 'u8[65536]{0}', space=vmem, size = 0x10000, scoped, tag = 'input window, operand 4']
    #allocation9 [shape = 'u8[131072]{0}', space=vmem, size = 0x20000, scoped, tag = 'output window, operand 0']
    %10 = vsyncpa [#allocation3], 0
    %s11 = scalar_lea.sflag [#allocation3], 1
    %12 = vsyncpa %s11, 0
    %13 = vsyncpa [#allocation6], 0
    %14 = vsyncpa [#allocation4], 0
    %s15 = scalar_lea.sflag [#allocation4], 1
    %16 = vsyncpa %s15, 0
    loop: start=0, step=1, limit=4
    $region2: #{tpu_custom_call.1} parent=1 // loop_pre_header
      _
    $region3: #{tpu_custom_call.1} parent=1 // loop_header
      %s18 = sphi 0, %s22
      %p19 = scmp.ge.s32.totalorder %s18, 4
      %s28 = sphi 0, %s30
      %s31 = sphi 0, %s28
      %s32 = sphi 0, %s31
      %s48 = sphi 0, %s32
      %s52 = sphi 0, %s52
      %s54 = sphi 0, %s52
      %s55 = sphi 0, %s54
      %s69 = sphi 0, %s55
      %s75 = sphi 0, %s77
      %s78 = sphi 0, %s75
      %s79 = sphi 0, %s78
      %s95 = sphi 0, %s79
      %s101 = sphi 0, %s103
      %s104 = sphi 0, %s101
      %s105 = sphi 0, %s104
      %s121 = sphi 0, %s105
      %s127 = sphi 0, %s129
      %s130 = sphi 0, %s127
      %s131 = sphi 0, %s130
      %s147 = sphi 0, %s131
      %s153 = sphi 0, %s155
      %s156 = sphi 0, %s153
      %s157 = sphi 0, %s156
      %s173 = sphi 0, %s157
    $region4: #{tpu_custom_call.1} parent=1 // loop_header_branch
      %21 = sbr.rel (%p19) target = $region8
    $region5: #{tpu_custom_call.1} parent=1 // loop_body
      %s23 = ssub.s32 %s18, 1
      %s24 = ssub.s32 %s18, 2
      %s25 = sadd.s32 %s18, 1
      %s26 = ssub.s32 %s18, %s25
      %p27 = scmp.eq.s32.totalorder %s26, 0
      %s29 = sadd.s32 %s28, 1
      %s30 = scalar_select %p27, %s28, %s29
      %p33 = pneg %p27
      %p34 = scmp.eq.s32.totalorder %s18, 1
      %p35 = por %p33, %p34
      %p36 = scmp.ne.s32.totalorder %s28, %s31
      %p37 = scmp.eq.s32.totalorder %s18, 0
      %p38 = por %p36, %p37
      %p39 = scmp.ne.s32.totalorder %s28, %s31
      %p40 = scmp.eq.s32.totalorder %s23, 1
      %p41 = por %p39, %p40
      %p42 = scmp.ne.s32.totalorder %s31, %s32
      %p43 = scmp.eq.s32.totalorder %s23, 0
      %p44 = por %p42, %p43
      %p45 = scmp.ne.s32.totalorder %s31, %s32
      %p46 = scmp.eq.s32.totalorder %s24, 1
      %p47 = por %p45, %p46
      %p49 = scmp.ne.s32.totalorder %s32, %s48
      %p50 = scmp.eq.s32.totalorder %s24, 0
      %p51 = por %p49, %p50
      %s53 = sadd.s32 %s52, 1
      %p56 = scmp.eq.s32.totalorder %s18, 1
      %p57 = scmp.ne.s32.totalorder %s52, %s54
      %p58 = scmp.eq.s32.totalorder %s18, 0
      %p59 = por %p57, %p58
      %p60 = scmp.ne.s32.totalorder %s52, %s54
      %p61 = scmp.eq.s32.totalorder %s23, 1
      %p62 = por %p60, %p61
      %p63 = scmp.ne.s32.totalorder %s54, %s55
      %p64 = scmp.eq.s32.totalorder %s23, 0
      %p65 = por %p63, %p64
      %p66 = scmp.ne.s32.totalorder %s54, %s55
      %p67 = scmp.eq.s32.totalorder %s24, 1
      %p68 = por %p66, %p67
      %p70 = scmp.ne.s32.totalorder %s55, %s69
      %p71 = scmp.eq.s32.totalorder %s24, 0
      %p72 = por %p70, %p71
      %s73 = ssub.s32 %s18, %s25
      %p74 = scmp.eq.s32.totalorder %s73, 0
      %s76 = sadd.s32 %s75, 1
      %s77 = scalar_select %p74, %s75, %s76
      %p80 = pneg %p74
      %p81 = scmp.eq.s32.totalorder %s18, 1
      %p82 = por %p80, %p81
      %p83 = scmp.ne.s32.totalorder %s75, %s78
      %p84 = scmp.eq.s32.totalorder %s18, 0
      %p85 = por %p83, %p84
      %p86 = scmp.ne.s32.totalorder %s75, %s78
      %p87 = scmp.eq.s32.totalorder %s23, 1
      %p88 = por %p86, %p87
      %p89 = scmp.ne.s32.totalorder %s78, %s79
      %p90 = scmp.eq.s32.totalorder %s23, 0
      %p91 = por %p89, %p90
      %p92 = scmp.ne.s32.totalorder %s78, %s79
      %p93 = scmp.eq.s32.totalorder %s24, 1
      %p94 = por %p92, %p93
      %p96 = scmp.ne.s32.totalorder %s79, %s95
      %p97 = scmp.eq.s32.totalorder %s24, 0
      %p98 = por %p96, %p97
      %s99 = ssub.s32 %s18, %s25
      %p100 = scmp.eq.s32.totalorder %s99, 0
      %s102 = sadd.s32 %s101, 1
      %s103 = scalar_select %p100, %s101, %s102
      %p106 = pneg %p100
      %p107 = scmp.eq.s32.totalorder %s18, 1
      %p108 = por %p106, %p107
      %p109 = scmp.ne.s32.totalorder %s101, %s104
      %p110 = scmp.eq.s32.totalorder %s18, 0
      %p111 = por %p109, %p110
      %p112 = scmp.ne.s32.totalorder %s101, %s104
      %p113 = scmp.eq.s32.totalorder %s23, 1
      %p114 = por %p112, %p113
      %p115 = scmp.ne.s32.totalorder %s104, %s105
      %p116 = scmp.eq.s32.totalorder %s23, 0
      %p117 = por %p115, %p116
      %p118 = scmp.ne.s32.totalorder %s104, %s105
      %p119 = scmp.eq.s32.totalorder %s24, 1
      %p120 = por %p118, %p119
      %p122 = scmp.ne.s32.totalorder %s105, %s121
      %p123 = scmp.eq.s32.totalorder %s24, 0
      %p124 = por %p122, %p123
      %s125 = ssub.s32 %s18, %s25
      %p126 = scmp.eq.s32.totalorder %s125, 0
      %s128 = sadd.s32 %s127, 1
      %s129 = scalar_select %p126, %s127, %s128
      %p132 = pneg %p126
      %p133 = scmp.eq.s32.totalorder %s18, 1
      %p134 = por %p132, %p133
      %p135 = scmp.ne.s32.totalorder %s127, %s130
      %p136 = scmp.eq.s32.totalorder %s18, 0
      %p137 = por %p135, %p136
      %p138 = scmp.ne.s32.totalorder %s127, %s130
      %p139 = scmp.eq.s32.totalorder %s23, 1
      %p140 = por %p138, %p139
      %p141 = scmp.ne.s32.totalorder %s130, %s131
      %p142 = scmp.eq.s32.totalorder %s23, 0
      %p143 = por %p141, %p142
      %p144 = scmp.ne.s32.totalorder %s130, %s131
      %p145 = scmp.eq.s32.totalorder %s24, 1
      %p146 = por %p144, %p145
      %p148 = scmp.ne.s32.totalorder %s131, %s147
      %p149 = scmp.eq.s32.totalorder %s24, 0
      %p150 = por %p148, %p149
      %s151 = ssub.s32 %s18, %s25
      %p152 = scmp.eq.s32.totalorder %s151, 0
      %s154 = sadd.s32 %s153, 1
      %s155 = scalar_select %p152, %s153, %s154
      %p158 = pneg %p152
      %p159 = scmp.eq.s32.totalorder %s18, 1
      %p160 = por %p158, %p159
      %p161 = scmp.ne.s32.totalorder %s153, %s156
      %p162 = scmp.eq.s32.totalorder %s18, 0
      %p163 = por %p161, %p162
      %p164 = scmp.ne.s32.totalorder %s153, %s156
      %p165 = scmp.eq.s32.totalorder %s23, 1
      %p166 = por %p164, %p165
      %p167 = scmp.ne.s32.totalorder %s156, %s157
      %p168 = scmp.eq.s32.totalorder %s23, 0
      %p169 = por %p167, %p168
      %p170 = scmp.ne.s32.totalorder %s156, %s157
      %p171 = scmp.eq.s32.totalorder %s24, 1
      %p172 = por %p170, %p171
      %p174 = scmp.ne.s32.totalorder %s157, %s173
      %p175 = scmp.eq.s32.totalorder %s24, 0
      %p176 = por %p174, %p175
      %p177 = scmp.le.s32.totalorder 1, %s18
      %p178 = scmp.lt.s32.totalorder %s18, 3
      %p179 = pnand %p177, %p178
      %p180 = pneg %p179
      // Predicated region
      $region9: #{tpu_custom_call.1} parent=5 // pred_check
        _
      $region10: #{tpu_custom_call.1} parent=5 // pred_check_branch
        %182 = sbr.rel (%p179) target = $region12
      $region11: #{tpu_custom_call.1} parent=5 // pred_region
        %s183 = ssub.s32 %s18, 1
        // Predicated region
        $region13: #{tpu_custom_call.1} parent=11 // pred_check
          %p184 = pneg %p65
        $region14: #{tpu_custom_call.1} parent=11 // pred_check_branch
          %186 = sbr.rel (%p184) target = $region16
        $region15: #{tpu_custom_call.1} parent=11 // pred_region
          %s188 = ssub.s32 2048, 2048
          %189 = vsyncadd [#allocation6], %s188
          %s190 = sshll.u32 [#allocation5], 4
          %s191 = int_to_ptr.vmem [resolvable:$true] %s190
          %196 = dma.hbm_to_vmem [thread:$0]  %s1, 2048, %s191, [#allocation6], 128, 128, 8
        $region16: #{tpu_custom_call.1} parent=11 // pred_fallthru
          _
      $region12: #{tpu_custom_call.1} parent=5 // pred_fallthru
        _
      %p197 = scmp.lt.s32.totalorder %s18, 2
      // Predicated region
      $region17: #{tpu_custom_call.1} parent=5 // pred_check
        %p198 = pneg %p197
      $region18: #{tpu_custom_call.1} parent=5 // pred_check_branch
        %200 = sbr.rel (%p198) target = $region20
      $region19: #{tpu_custom_call.1} parent=5 // pred_region
        // Predicated region
        $region21: #{tpu_custom_call.1} parent=19 // pred_check
          %p201 = pneg %p38
        $region22: #{tpu_custom_call.1} parent=19 // pred_check_branch
          %203 = sbr.rel (%p201) target = $region24
        $region23: #{tpu_custom_call.1} parent=19 // pred_region
          %s204 = sand.u32 %s18, 1
          %s205 = scalar_lea.sflag [#allocation3], %s204
          %s206 = sand.u32 %s28, 1
          %s207 = smul.addr %s206, 64
          %s208 = scalar_lea.vmem [#allocation2], %s207
          %s210 = ssub.s32 1024, 1024
          %211 = vsyncadd %s205, %s210
          %s212 = smul.addr %s18, 16
          %s213 = smul.addr %s212, 64
          %s214 = scalar_lea.hbm %s0, %s213
          %s215 = sshll.u32 %s208, 4
          %s216 = int_to_ptr.vmem [resolvable:$true] %s215
          %221 = dma.hbm_to_vmem [thread:$0]  %s214, 1024, %s216, %s205, 64, 64, 4
        $region24: #{tpu_custom_call.1} parent=19 // pred_fallthru
          _
        // Predicated region
        $region25: #{tpu_custom_call.1} parent=19 // pred_check
          %p222 = pneg %p85
        $region26: #{tpu_custom_call.1} parent=19 // pred_check_branch
          %224 = sbr.rel (%p222) target = $region28
        $region27: #{tpu_custom_call.1} parent=19 // pred_region
          %s225 = sand.u32 %s18, 1
          %s226 = scalar_lea.sflag [#allocation3], %s225
          %s227 = sand.u32 %s75, 1
          %s228 = smul.addr %s227, 192
          %s229 = scalar_lea.vmem [#allocation7], %s228
          %s231 = ssub.s32 3072, 3072
          %232 = vsyncadd %s226, %s231
          %s233 = smul.addr %s18, 48
          %s234 = smul.addr %s233, 64
          %s235 = scalar_lea.hbm %s2, %s234
          %s236 = sshll.u32 %s229, 4
          %s237 = int_to_ptr.vmem [resolvable:$true] %s236
          %242 = dma.hbm_to_vmem [thread:$0]  %s235, 3072, %s237, %s226, 64, 64, 4
        $region28: #{tpu_custom_call.1} parent=19 // pred_fallthru
          _
        // Predicated region
        $region29: #{tpu_custom_call.1} parent=19 // pred_check
          %p243 = pneg %p111
        $region30: #{tpu_custom_call.1} parent=19 // pred_check_branch
          %245 = sbr.rel (%p243) target = $region32
        $region31: #{tpu_custom_call.1} parent=19 // pred_region
          %p246 = scmp.lt.s32.totalorder %s18, 1
          %s247 = scalar_select %p246, %s18, 1
          %s248 = smul.addr %s247, 4
          %s249 = scalar_lea.vmem %s3, %s248
        $region32: #{tpu_custom_call.1} parent=19 // pred_fallthru
          _
        // Predicated region
        $region33: #{tpu_custom_call.1} parent=19 // pred_check
          %p250 = pneg %p137
        $region34: #{tpu_custom_call.1} parent=19 // pred_check_branch
          %252 = sbr.rel (%p250) target = $region36
        $region35: #{tpu_custom_call.1} parent=19 // pred_region
          %s253 = sand.u32 %s18, 1
          %s254 = scalar_lea.sflag [#allocation3], %s253
          %s255 = sand.u32 %s127, 1
          %s256 = smul.addr %s255, 64
          %s257 = scalar_lea.vmem [#allocation8], %s256
          %s259 = ssub.s32 1024, 1024
          %260 = vsyncadd %s254, %s259
          %s261 = smul.addr %s18, 16
          %s262 = smul.addr %s261, 64
          %s263 = scalar_lea.hbm %s4, %s262
          %s264 = sshll.u32 %s257, 4
          %s265 = int_to_ptr.vmem [resolvable:$true] %s264
          %270 = dma.hbm_to_vmem [thread:$0]  %s263, 1024, %s265, %s254, 64, 64, 4
        $region36: #{tpu_custom_call.1} parent=19 // pred_fallthru
          _
      $region20: #{tpu_custom_call.1} parent=5 // pred_fallthru
        _
      %p271 = scmp.le.s32.totalorder 1, %s18
      %p272 = scmp.lt.s32.totalorder %s18, 3
      %p273 = pnand %p271, %p272
      %p274 = pneg %p273
      // Predicated region
      $region37: #{tpu_custom_call.1} parent=5 // pred_check
        _
      $region38: #{tpu_custom_call.1} parent=5 // pred_check_branch
        %276 = sbr.rel (%p273) target = $region40
      $region39: #{tpu_custom_call.1} parent=5 // pred_region
        %s277 = ssub.s32 %s18, 1
        %s278 = sand.u32 %s23, 1
        %s279 = scalar_lea.sflag [#allocation3], %s278
        %s280 = sand.u32 %s31, 1
        %s281 = smul.addr %s280, 64
        %s282 = scalar_lea.vmem [#allocation2], %s281
        // Predicated region
        $region41: #{tpu_custom_call.1} parent=39 // pred_check
          %p283 = pneg %p44
        $region42: #{tpu_custom_call.1} parent=39 // pred_check_branch
          %285 = sbr.rel (%p283) target = $region44
        $region43: #{tpu_custom_call.1} parent=39 // pred_region
          %286 = dma.done %s279, 1024
        $region44: #{tpu_custom_call.1} parent=39 // pred_fallthru
          _
        // Predicated region
        $region45: #{tpu_custom_call.1} parent=39 // pred_check
          %p287 = pneg %p65
        $region46: #{tpu_custom_call.1} parent=39 // pred_check_branch
          %289 = sbr.rel (%p287) target = $region48
        $region47: #{tpu_custom_call.1} parent=39 // pred_region
          %290 = dma.done [#allocation6], 2048
        $region48: #{tpu_custom_call.1} parent=39 // pred_fallthru
          _
        %s291 = sand.u32 %s23, 1
        %s292 = scalar_lea.sflag [#allocation3], %s291
        %s293 = sand.u32 %s78, 1
        %s294 = smul.addr %s293, 192
        %s295 = scalar_lea.vmem [#allocation7], %s294
        // Predicated region
        $region49: #{tpu_custom_call.1} parent=39 // pred_check
          %p296 = pneg %p91
        $region50: #{tpu_custom_call.1} parent=39 // pred_check_branch
          %298 = sbr.rel (%p296) target = $region52
        $region51: #{tpu_custom_call.1} parent=39 // pred_region
          %299 = dma.done %s292, 3072
        $region52: #{tpu_custom_call.1} parent=39 // pred_fallthru
          _
        %s300 = sand.u32 %s23, 1
        %s301 = scalar_lea.sflag [#allocation3], %s300
        %s302 = sand.u32 %s130, 1
        %s303 = smul.addr %s302, 64
        %s304 = scalar_lea.vmem [#allocation8], %s303
        // Predicated region
        $region53: #{tpu_custom_call.1} parent=39 // pred_check
          %p305 = pneg %p143
        $region54: #{tpu_custom_call.1} parent=39 // pred_check_branch
          %307 = sbr.rel (%p305) target = $region56
        $region55: #{tpu_custom_call.1} parent=39 // pred_region
          %308 = dma.done %s301, 1024
        $region56: #{tpu_custom_call.1} parent=39 // pred_fallthru
          _
        %s309 = sand.u32 %s23, 1
        %s310 = scalar_lea.sflag [#allocation3], %s309
        %s311 = sand.u32 %s31, 1
        %s312 = smul.addr %s311, 64
        %s313 = scalar_lea.vmem [#allocation2], %s312
        %p314 = pneg %p44
        %p315 = pneg %p41
        %p316 = pneg %p65
        %p317 = pneg %p62
        %s318 = sand.u32 %s23, 1
        %s319 = scalar_lea.sflag [#allocation3], %s318
        %s320 = sand.u32 %s78, 1
        %s321 = smul.addr %s320, 192
        %s322 = scalar_lea.vmem [#allocation7], %s321
        %p323 = pneg %p91
        %p324 = pneg %p88
        %p325 = scmp.lt.s32.totalorder %s23, 1
        %s326 = scalar_select %p325, %s23, 1
        %s327 = smul.addr %s326, 4
        %s328 = scalar_lea.vmem %s3, %s327
        %p329 = pneg %p117
        %p330 = pneg %p114
        %s331 = sand.u32 %s23, 1
        %s332 = scalar_lea.sflag [#allocation3], %s331
        %s333 = sand.u32 %s130, 1
        %s334 = smul.addr %s333, 64
        %s335 = scalar_lea.vmem [#allocation8], %s334
        %p336 = pneg %p143
        %p337 = pneg %p140
        %p338 = pneg %p169
        %p339 = pneg %p166
        %s340 = sand.u32 %s156, 1
        %s341 = scalar_lea.sflag [#allocation4], %s340
        %s342 = sand.u32 %s156, 1
        %s343 = smul.addr %s342, 128
        %s344 = scalar_lea.vmem [#allocation9], %s343
        %p345 = scmp.lt.s32.totalorder %s23, 1
        %s346 = scalar_select %p345, %s23, 1
        %s347 = smul.addr %s346, 4
        %s348 = scalar_lea.vmem %s3, %s347
        %v350 = vld [vmem:[%s282] sm:$0xf]
        %v351 = vld [vmem:[%s282 + $0x4] sm:$0xf]
        %v352 = vld [vmem:[%s282 + $0x8] sm:$0xf]
        %v353 = vld [vmem:[%s282 + $0xc] sm:$0xf]
        %v354 = vld [vmem:[%s282 + $0x10] sm:$0xf]
        %v355 = vld [vmem:[%s282 + $0x14] sm:$0xf]
        %v356 = vld [vmem:[%s282 + $0x18] sm:$0xf]
        %v357 = vld [vmem:[%s282 + $0x1c] sm:$0xf]
        %v358 = vld [vmem:[%s282 + $0x20] sm:$0xf]
        %v359 = vld [vmem:[%s282 + $0x24] sm:$0xf]
        %v360 = vld [vmem:[%s282 + $0x28] sm:$0xf]
        %v361 = vld [vmem:[%s282 + $0x2c] sm:$0xf]
        %v362 = vld [vmem:[%s282 + $0x30] sm:$0xf]
        %v363 = vld [vmem:[%s282 + $0x34] sm:$0xf]
        %v364 = vld [vmem:[%s282 + $0x38] sm:$0xf]
        %v365 = vld [vmem:[%s282 + $0x3c] sm:$0xf]
        %v366 = vld [vmem:[#allocation5] sm:$0xff]
        %v367 = vld [vmem:[#allocation5 + $0x8] sm:$0xff]
        %v368 = vld [vmem:[#allocation5 + $0x10] sm:$0xff]
        %v369 = vld [vmem:[#allocation5 + $0x18] sm:$0xff]
        %v370 = vld [vmem:[#allocation5 + $0x20] sm:$0xff]
        %v371 = vld [vmem:[#allocation5 + $0x28] sm:$0xff]
        %v372 = vld [vmem:[#allocation5 + $0x30] sm:$0xff]
        %v373 = vld [vmem:[#allocation5 + $0x38] sm:$0xff]
        %v374 = vld [vmem:[#allocation5 + $0x40] sm:$0xff]
        %v375 = vld [vmem:[#allocation5 + $0x48] sm:$0xff]
        %v376 = vld [vmem:[#allocation5 + $0x50] sm:$0xff]
        %v377 = vld [vmem:[#allocation5 + $0x58] sm:$0xff]
        %v378 = vld [vmem:[#allocation5 + $0x60] sm:$0xff]
        %v379 = vld [vmem:[#allocation5 + $0x68] sm:$0xff]
        %v380 = vld [vmem:[#allocation5 + $0x70] sm:$0xff]
        %v381 = vld [vmem:[#allocation5 + $0x78] sm:$0xff]
        %v382 = vld [vmem:[%s348] sm:$0x7]
        %v383 = vld [vmem:[%s295] sm:$0xf]
        %v384 = vld [vmem:[%s295 + $0x4] sm:$0xf]
        %v385 = vld [vmem:[%s295 + $0x8] sm:$0xf]
        %v386 = vld [vmem:[%s295 + $0xc] sm:$0xf]
        %v387 = vld [vmem:[%s295 + $0x10] sm:$0xf]
        %v388 = vld [vmem:[%s295 + $0x14] sm:$0xf]
        %v389 = vld [vmem:[%s295 + $0x18] sm:$0xf]
        %v390 = vld [vmem:[%s295 + $0x1c] sm:$0xf]
        %v391 = vld [vmem:[%s295 + $0x20] sm:$0xf]
        %v392 = vld [vmem:[%s295 + $0x24] sm:$0xf]
        %v393 = vld [vmem:[%s295 + $0x28] sm:$0xf]
        %v394 = vld [vmem:[%s295 + $0x2c] sm:$0xf]
        %v395 = vld [vmem:[%s295 + $0x30] sm:$0xf]
        %v396 = vld [vmem:[%s295 + $0x34] sm:$0xf]
        %v397 = vld [vmem:[%s295 + $0x38] sm:$0xf]
        %v398 = vld [vmem:[%s295 + $0x3c] sm:$0xf]
        %v399 = vpack.c.bf16 %v367, %v366
        %v400 = vpack.c.bf16 %v369, %v368
        %v401 = vpack.c.bf16 %v371, %v370
        %v402 = vpack.c.bf16 %v373, %v372
        %v403 = vpack.c.bf16 %v375, %v374
        %v404 = vpack.c.bf16 %v377, %v376
        %v405 = vpack.c.bf16 %v379, %v378
        %v406 = vpack.c.bf16 %v381, %v380
        %v423 = vunpack.c.l.b16 %v350
        %v424 = vunpack.c.l.b16 %v351
        %v425 = vunpack.c.l.b16 %v352
        %v426 = vunpack.c.l.b16 %v353
        %v427 = vunpack.c.l.b16 %v354
        %v428 = vunpack.c.l.b16 %v355
        %v429 = vunpack.c.l.b16 %v356
        %v430 = vunpack.c.l.b16 %v357
        %v431 = vunpack.c.l.b16 %v358
        %v432 = vunpack.c.l.b16 %v359
        %v433 = vunpack.c.l.b16 %v360
        %v434 = vunpack.c.l.b16 %v361
        %v435 = vunpack.c.l.b16 %v362
        %v436 = vunpack.c.l.b16 %v363
        %v437 = vunpack.c.l.b16 %v364
        %v438 = vunpack.c.l.b16 %v365
        %v439 = vpack.c.b16 %v424, %v423
        %v440 = vpack.c.b16 %v426, %v425
        %v441 = vpack.c.b16 %v428, %v427
        %v442 = vpack.c.b16 %v430, %v429
        %v443 = vpack.c.b16 %v432, %v431
        %v444 = vpack.c.b16 %v434, %v433
        %v445 = vpack.c.b16 %v436, %v435
        %v446 = vpack.c.b16 %v438, %v437
        %455 = vmatprep.subr.bf16.mxu0 0
        %456 = vmatpush1.bf16.msra.mxu0 %v406
        %457 = vmatprep.subr.bf16.mxu0 0
        %458 = vmatpush1.bf16.msra.mxu0 %v405
        %459 = vmatprep.subr.bf16.mxu0 0
        %460 = vmatpush1.bf16.msra.mxu0 %v404
        %461 = vmatprep.subr.bf16.mxu0 0
        %462 = vmatpush1.bf16.msra.mxu0 %v403
        %463 = vmatprep.subr.bf16.mxu0 0
        %464 = vmatpush1.bf16.msra.mxu0 %v402
        %465 = vmatprep.subr.bf16.mxu0 0
        %466 = vmatpush1.bf16.msra.mxu0 %v401
        %467 = vmatprep.subr.bf16.mxu0 0
        %468 = vmatpush1.bf16.msra.mxu0 %v400
        %469 = vmatprep.subr.bf16.mxu0 0
        %470 = vmatpush1.bf16.msra.mxu0 %v399
        %471 = vmatprep.subr.bf16.mxu0 0
        %472 = vmatpush2.bf16.msra.mxu0 0
        %473 = vmatprep.subr.bf16.mxu0 0
        %474 = vmatpush2.bf16.msra.mxu0 0
        %475 = vmatprep.subr.bf16.mxu0 0
        %476 = vmatpush2.bf16.msra.mxu0 0
        %477 = vmatprep.subr.bf16.mxu0 0
        %478 = vmatpush2.bf16.msra.mxu0 0
        %479 = vmatprep.subr.bf16.mxu0 0
        %480 = vmatpush2.bf16.msra.mxu0 0
        %481 = vmatprep.subr.bf16.mxu0 0
        %482 = vmatpush2.bf16.msra.mxu0 0
        %483 = vmatprep.subr.bf16.mxu0 0
        %484 = vmatpush2.bf16.msra.mxu0 0
        %485 = vmatprep.subr.bf16.mxu0 0
        %486 = vmatpush2.bf16.msra.mxu0 0
        %487 = vmatprep.mubr.bf16.mxu0 0
        %488 = vmatmul.mubr.bf16.gmra.mxu0 %v439
        %v489 = vpop.f32.mrf.mxu0
        %v490 = vadd.f32 0.0, %v489
        %v491 = vpop.f32.mrf.mxu0
        %v492 = vpop.f32.mrf.mxu0
        %v493 = vadd.f32 0.0, %v492
        %v494 = vpop.f32.mrf.mxu0
        %495 = vmatprep.mubr.bf16.mxu0 0
        %496 = vmatmul.mubr.bf16.gmra.mxu0 %v440
        %v497 = vpop.f32.mrf.mxu0
        %v498 = vadd.f32 0.0, %v497
        %v499 = vpop.f32.mrf.mxu0
        %v500 = vpop.f32.mrf.mxu0
        %v501 = vadd.f32 0.0, %v500
        %v502 = vpop.f32.mrf.mxu0
        %503 = vmatprep.mubr.bf16.mxu0 0
        %504 = vmatmul.mubr.bf16.gmra.mxu0 %v441
        %v505 = vpop.f32.mrf.mxu0
        %v506 = vadd.f32 0.0, %v505
        %v507 = vpop.f32.mrf.mxu0
        %v508 = vpop.f32.mrf.mxu0
        %v509 = vadd.f32 0.0, %v508
        %v510 = vpop.f32.mrf.mxu0
        %511 = vmatprep.mubr.bf16.mxu0 0
        %512 = vmatmul.mubr.bf16.gmra.mxu0 %v442
        %v513 = vpop.f32.mrf.mxu0
        %v514 = vadd.f32 0.0, %v513
        %v515 = vpop.f32.mrf.mxu0
        %v516 = vpop.f32.mrf.mxu0
        %v517 = vadd.f32 0.0, %v516
        %v518 = vpop.f32.mrf.mxu0
        %519 = vmatprep.mubr.bf16.mxu0 0
        %520 = vmatmul.mubr.bf16.gmra.mxu0 %v443
        %v521 = vpop.f32.mrf.mxu0
        %v522 = vadd.f32 0.0, %v521
        %v523 = vpop.f32.mrf.mxu0
        %v524 = vpop.f32.mrf.mxu0
        %v525 = vadd.f32 0.0, %v524
        %v526 = vpop.f32.mrf.mxu0
        %527 = vmatprep.mubr.bf16.mxu0 0
        %528 = vmatmul.mubr.bf16.gmra.mxu0 %v444
        %v529 = vpop.f32.mrf.mxu0
        %v530 = vadd.f32 0.0, %v529
        %v531 = vpop.f32.mrf.mxu0
        %v532 = vpop.f32.mrf.mxu0
        %v533 = vadd.f32 0.0, %v532
        %v534 = vpop.f32.mrf.mxu0
        %535 = vmatprep.mubr.bf16.mxu0 0
        %536 = vmatmul.mubr.bf16.gmra.mxu0 %v445
        %v537 = vpop.f32.mrf.mxu0
        %v538 = vadd.f32 0.0, %v537
        %v539 = vpop.f32.mrf.mxu0
        %v540 = vpop.f32.mrf.mxu0
        %v541 = vadd.f32 0.0, %v540
        %v542 = vpop.f32.mrf.mxu0
        %543 = vmatprep.mubr.bf16.mxu0 0
        %544 = vmatmul.mubr.bf16.gmra.mxu0 %v446
        %v545 = vpop.f32.mrf.mxu0
        %v546 = vadd.f32 0.0, %v545
        %v547 = vpop.f32.mrf.mxu0
        %v548 = vpop.f32.mrf.mxu0
        %v549 = vadd.f32 0.0, %v548
        %v550 = vpop.f32.mrf.mxu0
        %551 = vdwg.mxu0
        %v552 = vpack.c.bf16 %v493, %v490
        %v553 = vpack.c.bf16 %v501, %v498
        %v554 = vpack.c.bf16 %v509, %v506
        %v555 = vpack.c.bf16 %v517, %v514
        %v556 = vpack.c.bf16 %v525, %v522
        %v557 = vpack.c.bf16 %v533, %v530
        %v558 = vpack.c.bf16 %v541, %v538
        %v559 = vpack.c.bf16 %v549, %v546
        %v560 = vlaneseq
        %v561 = vshrl.u32 %v560, 7
        %v562 = vsub.s32 0, %v561
        %v563 = vrot.slane %v382, %v562
        %v580 = vunpack.c.l.b16 %v383
        %v581 = vunpack.c.l.b16 %v384
        %v582 = vunpack.c.l.b16 %v385
        %v583 = vunpack.c.l.b16 %v386
        %v584 = vunpack.c.l.b16 %v387
        %v585 = vunpack.c.l.b16 %v388
        %v586 = vunpack.c.l.b16 %v389
        %v587 = vunpack.c.l.b16 %v390
        %v588 = vunpack.c.l.b16 %v391
        %v589 = vunpack.c.l.b16 %v392
        %v590 = vunpack.c.l.b16 %v393
        %v591 = vunpack.c.l.b16 %v394
        %v592 = vunpack.c.l.b16 %v395
        %v593 = vunpack.c.l.b16 %v396
        %v594 = vunpack.c.l.b16 %v397
        %v595 = vunpack.c.l.b16 %v398
        %v596 = vpack.c.b16 %v581, %v580
        %v597 = vpack.c.b16 %v583, %v582
        %v598 = vpack.c.b16 %v585, %v584
        %v599 = vpack.c.b16 %v587, %v586
        %v600 = vpack.c.b16 %v589, %v588
        %v601 = vpack.c.b16 %v591, %v590
        %v602 = vpack.c.b16 %v593, %v592
        %v603 = vpack.c.b16 %v595, %v594
        %612 = vmatprep.subr.bf16.mxu0 0
        %613 = vmatpush1.bf16.msra.mxu0 %v603
        %614 = vmatprep.subr.bf16.mxu0 0
        %615 = vmatpush1.bf16.msra.mxu0 %v602
        %616 = vmatprep.subr.bf16.mxu0 0
        %617 = vmatpush1.bf16.msra.mxu0 %v601
        %618 = vmatprep.subr.bf16.mxu0 0
        %619 = vmatpush1.bf16.msra.mxu0 %v600
        %620 = vmatprep.subr.bf16.mxu0 0
        %621 = vmatpush1.bf16.msra.mxu0 %v599
        %622 = vmatprep.subr.bf16.mxu0 0
        %623 = vmatpush1.bf16.msra.mxu0 %v598
        %624 = vmatprep.subr.bf16.mxu0 0
        %625 = vmatpush1.bf16.msra.mxu0 %v597
        %626 = vmatprep.subr.bf16.mxu0 0
        %627 = vmatpush1.bf16.msra.mxu0 %v596
        %628 = vmatprep.subr.bf16.mxu0 0
        %629 = vmatpush2.bf16.msra.mxu0 0
        %630 = vmatprep.subr.bf16.mxu0 0
        %631 = vmatpush2.bf16.msra.mxu0 0
        %632 = vmatprep.subr.bf16.mxu0 0
        %633 = vmatpush2.bf16.msra.mxu0 0
        %634 = vmatprep.subr.bf16.mxu0 0
        %635 = vmatpush2.bf16.msra.mxu0 0
        %636 = vmatprep.subr.bf16.mxu0 0
        %637 = vmatpush2.bf16.msra.mxu0 0
        %638 = vmatprep.subr.bf16.mxu0 0
        %639 = vmatpush2.bf16.msra.mxu0 0
        %640 = vmatprep.subr.bf16.mxu0 0
        %641 = vmatpush2.bf16.msra.mxu0 0
        %642 = vmatprep.subr.bf16.mxu0 0
        %643 = vmatpush2.bf16.msra.mxu0 0
        %644 = vmatprep.mubr.bf16.mxu0 0
        %645 = vmatmul.mubr.bf16.gmra.mxu0 %v552
        %v646 = vpop.f32.mrf.mxu0
        %v647 = vadd.f32 %v563, %v646
        %v648 = vpop.f32.mrf.mxu0
        %v649 = vpop.f32.mrf.mxu0
        %v650 = vadd.f32 %v563, %v649
        %v651 = vpop.f32.mrf.mxu0
        %652 = vmatprep.mubr.bf16.mxu0 0
        %653 = vmatmul.mubr.bf16.gmra.mxu0 %v553
        %v654 = vpop.f32.mrf.mxu0
        %v655 = vadd.f32 %v563, %v654
        %v656 = vpop.f32.mrf.mxu0
        %v657 = vpop.f32.mrf.mxu0
        %v658 = vadd.f32 %v563, %v657
        %v659 = vpop.f32.mrf.mxu0
        %660 = vmatprep.mubr.bf16.mxu0 0
        %661 = vmatmul.mubr.bf16.gmra.mxu0 %v554
        %v662 = vpop.f32.mrf.mxu0
        %v663 = vadd.f32 %v563, %v662
        %v664 = vpop.f32.mrf.mxu0
        %v665 = vpop.f32.mrf.mxu0
        %v666 = vadd.f32 %v563, %v665
        %v667 = vpop.f32.mrf.mxu0
        %668 = vmatprep.mubr.bf16.mxu0 0
        %669 = vmatmul.mubr.bf16.gmra.mxu0 %v555
        %v670 = vpop.f32.mrf.mxu0
        %v671 = vadd.f32 %v563, %v670
        %v672 = vpop.f32.mrf.mxu0
        %v673 = vpop.f32.mrf.mxu0
        %v674 = vadd.f32 %v563, %v673
        %v675 = vpop.f32.mrf.mxu0
        %676 = vmatprep.mubr.bf16.mxu0 0
        %677 = vmatmul.mubr.bf16.gmra.mxu0 %v556
        %v678 = vpop.f32.mrf.mxu0
        %v679 = vadd.f32 %v563, %v678
        %v680 = vpop.f32.mrf.mxu0
        %v681 = vpop.f32.mrf.mxu0
        %v682 = vadd.f32 %v563, %v681
        %v683 = vpop.f32.mrf.mxu0
        %684 = vmatprep.mubr.bf16.mxu0 0
        %685 = vmatmul.mubr.bf16.gmra.mxu0 %v557
        %v686 = vpop.f32.mrf.mxu0
        %v687 = vadd.f32 %v563, %v686
        %v688 = vpop.f32.mrf.mxu0
        %v689 = vpop.f32.mrf.mxu0
        %v690 = vadd.f32 %v563, %v689
        %v691 = vpop.f32.mrf.mxu0
        %692 = vmatprep.mubr.bf16.mxu0 0
        %693 = vmatmul.mubr.bf16.gmra.mxu0 %v558
        %v694 = vpop.f32.mrf.mxu0
        %v695 = vadd.f32 %v563, %v694
        %v696 = vpop.f32.mrf.mxu0
        %v697 = vpop.f32.mrf.mxu0
        %v698 = vadd.f32 %v563, %v697
        %v699 = vpop.f32.mrf.mxu0
        %700 = vmatprep.mubr.bf16.mxu0 0
        %701 = vmatmul.mubr.bf16.gmra.mxu0 %v559
        %v702 = vpop.f32.mrf.mxu0
        %v703 = vadd.f32 %v563, %v702
        %v704 = vpop.f32.mrf.mxu0
        %v705 = vpop.f32.mrf.mxu0
        %v706 = vadd.f32 %v563, %v705
        %v707 = vpop.f32.mrf.mxu0
        %708 = vdwg.mxu0
        %v709 = vmax.f32 %v647, 0.0
        %v710 = vmax.f32 %v650, 0.0
        %v711 = vmax.f32 %v655, 0.0
        %v712 = vmax.f32 %v658, 0.0
        %v713 = vmax.f32 %v663, 0.0
        %v714 = vmax.f32 %v666, 0.0
        %v715 = vmax.f32 %v671, 0.0
        %v716 = vmax.f32 %v674, 0.0
        %v717 = vmax.f32 %v679, 0.0
        %v718 = vmax.f32 %v682, 0.0
        %v719 = vmax.f32 %v687, 0.0
        %v720 = vmax.f32 %v690, 0.0
        %v721 = vmax.f32 %v695, 0.0
        %v722 = vmax.f32 %v698, 0.0
        %v723 = vmax.f32 %v703, 0.0
        %v724 = vmax.f32 %v706, 0.0
        %s725 = scalar_lea.vmem %s295, 64 [#allocation7]
        %v726 = vld [vmem:[%s725] sm:$0xf]
        %v727 = vld [vmem:[%s725 + $0x4] sm:$0xf]
        %v728 = vld [vmem:[%s725 + $0x8] sm:$0xf]
        %v729 = vld [vmem:[%s725 + $0xc] sm:$0xf]
        %v730 = vld [vmem:[%s725 + $0x10] sm:$0xf]
        %v731 = vld [vmem:[%s725 + $0x14] sm:$0xf]
        %v732 = vld [vmem:[%s725 + $0x18] sm:$0xf]
        %v733 = vld [vmem:[%s725 + $0x1c] sm:$0xf]
        %v734 = vld [vmem:[%s725 + $0x20] sm:$0xf]
        %v735 = vld [vmem:[%s725 + $0x24] sm:$0xf]
        %v736 = vld [vmem:[%s725 + $0x28] sm:$0xf]
        %v737 = vld [vmem:[%s725 + $0x2c] sm:$0xf]
        %v738 = vld [vmem:[%s725 + $0x30] sm:$0xf]
        %v739 = vld [vmem:[%s725 + $0x34] sm:$0xf]
        %v740 = vld [vmem:[%s725 + $0x38] sm:$0xf]
        %v741 = vld [vmem:[%s725 + $0x3c] sm:$0xf]
        %v742 = vpack.c.bf16 %v710, %v709
        %v743 = vpack.c.bf16 %v712, %v711
        %v744 = vpack.c.bf16 %v714, %v713
        %v745 = vpack.c.bf16 %v716, %v715
        %v746 = vpack.c.bf16 %v718, %v717
        %v747 = vpack.c.bf16 %v720, %v719
        %v748 = vpack.c.bf16 %v722, %v721
        %v749 = vpack.c.bf16 %v724, %v723
        %v766 = vunpack.c.l.b16 %v726
        %v767 = vunpack.c.l.b16 %v727
        %v768 = vunpack.c.l.b16 %v728
        %v769 = vunpack.c.l.b16 %v729
        %v770 = vunpack.c.l.b16 %v730
        %v771 = vunpack.c.l.b16 %v731
        %v772 = vunpack.c.l.b16 %v732
        %v773 = vunpack.c.l.b16 %v733
        %v774 = vunpack.c.l.b16 %v734
        %v775 = vunpack.c.l.b16 %v735
        %v776 = vunpack.c.l.b16 %v736
        %v777 = vunpack.c.l.b16 %v737
        %v778 = vunpack.c.l.b16 %v738
        %v779 = vunpack.c.l.b16 %v739
        %v780 = vunpack.c.l.b16 %v740
        %v781 = vunpack.c.l.b16 %v741
        %v782 = vpack.c.b16 %v767, %v766
        %v783 = vpack.c.b16 %v769, %v768
        %v784 = vpack.c.b16 %v771, %v770
        %v785 = vpack.c.b16 %v773, %v772
        %v786 = vpack.c.b16 %v775, %v774
        %v787 = vpack.c.b16 %v777, %v776
        %v788 = vpack.c.b16 %v779, %v778
        %v789 = vpack.c.b16 %v781, %v780
        %798 = vmatprep.subr.bf16.mxu0 0
        %799 = vmatpush1.bf16.msra.mxu0 %v789
        %800 = vmatprep.subr.bf16.mxu0 0
        %801 = vmatpush1.bf16.msra.mxu0 %v788
        %802 = vmatprep.subr.bf16.mxu0 0
        %803 = vmatpush1.bf16.msra.mxu0 %v787
        %804 = vmatprep.subr.bf16.mxu0 0
        %805 = vmatpush1.bf16.msra.mxu0 %v786
        %806 = vmatprep.subr.bf16.mxu0 0
        %807 = vmatpush1.bf16.msra.mxu0 %v785
        %808 = vmatprep.subr.bf16.mxu0 0
        %809 = vmatpush1.bf16.msra.mxu0 %v784
        %810 = vmatprep.subr.bf16.mxu0 0
        %811 = vmatpush1.bf16.msra.mxu0 %v783
        %812 = vmatprep.subr.bf16.mxu0 0
        %813 = vmatpush1.bf16.msra.mxu0 %v782
        %814 = vmatprep.subr.bf16.mxu0 0
        %815 = vmatpush2.bf16.msra.mxu0 0
        %816 = vmatprep.subr.bf16.mxu0 0
        %817 = vmatpush2.bf16.msra.mxu0 0
        %818 = vmatprep.subr.bf16.mxu0 0
        %819 = vmatpush2.bf16.msra.mxu0 0
        %820 = vmatprep.subr.bf16.mxu0 0
        %821 = vmatpush2.bf16.msra.mxu0 0
        %822 = vmatprep.subr.bf16.mxu0 0
        %823 = vmatpush2.bf16.msra.mxu0 0
        %824 = vmatprep.subr.bf16.mxu0 0
        %825 = vmatpush2.bf16.msra.mxu0 0
        %826 = vmatprep.subr.bf16.mxu0 0
        %827 = vmatpush2.bf16.msra.mxu0 0
        %828 = vmatprep.subr.bf16.mxu0 0
        %829 = vmatpush2.bf16.msra.mxu0 0
        %830 = vmatprep.mubr.bf16.mxu0 0
        %831 = vmatmul.mubr.bf16.gmra.mxu0 %v742
        %v832 = vpop.f32.mrf.mxu0
        %v833 = vadd.f32 0.0, %v832
        %v834 = vpop.f32.mrf.mxu0
        %v835 = vpop.f32.mrf.mxu0
        %v836 = vadd.f32 0.0, %v835
        %v837 = vpop.f32.mrf.mxu0
        %838 = vmatprep.mubr.bf16.mxu0 0
        %839 = vmatmul.mubr.bf16.gmra.mxu0 %v743
        %v840 = vpop.f32.mrf.mxu0
        %v841 = vadd.f32 0.0, %v840
        %v842 = vpop.f32.mrf.mxu0
        %v843 = vpop.f32.mrf.mxu0
        %v844 = vadd.f32 0.0, %v843
        %v845 = vpop.f32.mrf.mxu0
        %846 = vmatprep.mubr.bf16.mxu0 0
        %847 = vmatmul.mubr.bf16.gmra.mxu0 %v744
        %v848 = vpop.f32.mrf.mxu0
        %v849 = vadd.f32 0.0, %v848
        %v850 = vpop.f32.mrf.mxu0
        %v851 = vpop.f32.mrf.mxu0
        %v852 = vadd.f32 0.0, %v851
        %v853 = vpop.f32.mrf.mxu0
        %854 = vmatprep.mubr.bf16.mxu0 0
        %855 = vmatmul.mubr.bf16.gmra.mxu0 %v745
        %v856 = vpop.f32.mrf.mxu0
        %v857 = vadd.f32 0.0, %v856
        %v858 = vpop.f32.mrf.mxu0
        %v859 = vpop.f32.mrf.mxu0
        %v860 = vadd.f32 0.0, %v859
        %v861 = vpop.f32.mrf.mxu0
        %862 = vmatprep.mubr.bf16.mxu0 0
        %863 = vmatmul.mubr.bf16.gmra.mxu0 %v746
        %v864 = vpop.f32.mrf.mxu0
        %v865 = vadd.f32 0.0, %v864
        %v866 = vpop.f32.mrf.mxu0
        %v867 = vpop.f32.mrf.mxu0
        %v868 = vadd.f32 0.0, %v867
        %v869 = vpop.f32.mrf.mxu0
        %870 = vmatprep.mubr.bf16.mxu0 0
        %871 = vmatmul.mubr.bf16.gmra.mxu0 %v747
        %v872 = vpop.f32.mrf.mxu0
        %v873 = vadd.f32 0.0, %v872
        %v874 = vpop.f32.mrf.mxu0
        %v875 = vpop.f32.mrf.mxu0
        %v876 = vadd.f32 0.0, %v875
        %v877 = vpop.f32.mrf.mxu0
        %878 = vmatprep.mubr.bf16.mxu0 0
        %879 = vmatmul.mubr.bf16.gmra.mxu0 %v748
        %v880 = vpop.f32.mrf.mxu0
        %v881 = vadd.f32 0.0, %v880
        %v882 = vpop.f32.mrf.mxu0
        %v883 = vpop.f32.mrf.mxu0
        %v884 = vadd.f32 0.0, %v883
        %v885 = vpop.f32.mrf.mxu0
        %886 = vmatprep.mubr.bf16.mxu0 0
        %887 = vmatmul.mubr.bf16.gmra.mxu0 %v749
        %v888 = vpop.f32.mrf.mxu0
        %v889 = vadd.f32 0.0, %v888
        %v890 = vpop.f32.mrf.mxu0
        %v891 = vpop.f32.mrf.mxu0
        %v892 = vadd.f32 0.0, %v891
        %v893 = vpop.f32.mrf.mxu0
        %894 = vdwg.mxu0
        %v895 = vpack.c.bf16 %v836, %v833
        %v896 = vpack.c.bf16 %v844, %v841
        %v897 = vpack.c.bf16 %v852, %v849
        %v898 = vpack.c.bf16 %v860, %v857
        %v899 = vpack.c.bf16 %v868, %v865
        %v900 = vpack.c.bf16 %v876, %v873
        %v901 = vpack.c.bf16 %v884, %v881
        %v902 = vpack.c.bf16 %v892, %v889
        %v903 = vlaneseq
        %v904 = vshrl.u32 %v903, 7
        %v905 = vsub.s32 1, %v904
        %v906 = vrot.slane %v382, %v905
        %907 = vmatprep.subr.bf16.mxu0 0
        %908 = vmatpush1.bf16.msra.mxu0 %v902
        %909 = vmatprep.subr.bf16.mxu0 0
        %910 = vmatpush1.bf16.msra.mxu0 %v901
        %911 = vmatprep.subr.bf16.mxu0 0
        %912 = vmatpush1.bf16.msra.mxu0 %v900
        %913 = vmatprep.subr.bf16.mxu0 0
        %914 = vmatpush1.bf16.msra.mxu0 %v899
        %915 = vmatprep.subr.bf16.mxu0 0
        %916 = vmatpush1.bf16.msra.mxu0 %v898
        %917 = vmatprep.subr.bf16.mxu0 0
        %918 = vmatpush1.bf16.msra.mxu0 %v897
        %919 = vmatprep.subr.bf16.mxu0 0
        %920 = vmatpush1.bf16.msra.mxu0 %v896
        %921 = vmatprep.subr.bf16.mxu0 0
        %922 = vmatpush1.bf16.msra.mxu0 %v895
        %923 = vmatprep.subr.bf16.mxu0 0
        %924 = vmatpush2.bf16.msra.mxu0 0
        %925 = vmatprep.subr.bf16.mxu0 0
        %926 = vmatpush2.bf16.msra.mxu0 0
        %927 = vmatprep.subr.bf16.mxu0 0
        %928 = vmatpush2.bf16.msra.mxu0 0
        %929 = vmatprep.subr.bf16.mxu0 0
        %930 = vmatpush2.bf16.msra.mxu0 0
        %931 = vmatprep.subr.bf16.mxu0 0
        %932 = vmatpush2.bf16.msra.mxu0 0
        %933 = vmatprep.subr.bf16.mxu0 0
        %934 = vmatpush2.bf16.msra.mxu0 0
        %935 = vmatprep.subr.bf16.mxu0 0
        %936 = vmatpush2.bf16.msra.mxu0 0
        %937 = vmatprep.subr.bf16.mxu0 0
        %938 = vmatpush2.bf16.msra.mxu0 0
        %939 = vmatprep.mubr.bf16.mxu0 0
        %940 = vmatmul.mubr.bf16.gmra.mxu0 %v439
        %v941 = vpop.f32.mrf.mxu0
        %v942 = vadd.f32 %v906, %v941
        %v943 = vpop.f32.mrf.mxu0
        %v944 = vpop.f32.mrf.mxu0
        %v945 = vadd.f32 %v906, %v944
        %v946 = vpop.f32.mrf.mxu0
        %947 = vmatprep.mubr.bf16.mxu0 0
        %948 = vmatmul.mubr.bf16.gmra.mxu0 %v440
        %v949 = vpop.f32.mrf.mxu0
        %v950 = vadd.f32 %v906, %v949
        %v951 = vpop.f32.mrf.mxu0
        %v952 = vpop.f32.mrf.mxu0
        %v953 = vadd.f32 %v906, %v952
        %v954 = vpop.f32.mrf.mxu0
        %955 = vmatprep.mubr.bf16.mxu0 0
        %956 = vmatmul.mubr.bf16.gmra.mxu0 %v441
        %v957 = vpop.f32.mrf.mxu0
        %v958 = vadd.f32 %v906, %v957
        %v959 = vpop.f32.mrf.mxu0
        %v960 = vpop.f32.mrf.mxu0
        %v961 = vadd.f32 %v906, %v960
        %v962 = vpop.f32.mrf.mxu0
        %963 = vmatprep.mubr.bf16.mxu0 0
        %964 = vmatmul.mubr.bf16.gmra.mxu0 %v442
        %v965 = vpop.f32.mrf.mxu0
        %v966 = vadd.f32 %v906, %v965
        %v967 = vpop.f32.mrf.mxu0
        %v968 = vpop.f32.mrf.mxu0
        %v969 = vadd.f32 %v906, %v968
        %v970 = vpop.f32.mrf.mxu0
        %971 = vmatprep.mubr.bf16.mxu0 0
        %972 = vmatmul.mubr.bf16.gmra.mxu0 %v443
        %v973 = vpop.f32.mrf.mxu0
        %v974 = vadd.f32 %v906, %v973
        %v975 = vpop.f32.mrf.mxu0
        %v976 = vpop.f32.mrf.mxu0
        %v977 = vadd.f32 %v906, %v976
        %v978 = vpop.f32.mrf.mxu0
        %979 = vmatprep.mubr.bf16.mxu0 0
        %980 = vmatmul.mubr.bf16.gmra.mxu0 %v444
        %v981 = vpop.f32.mrf.mxu0
        %v982 = vadd.f32 %v906, %v981
        %v983 = vpop.f32.mrf.mxu0
        %v984 = vpop.f32.mrf.mxu0
        %v985 = vadd.f32 %v906, %v984
        %v986 = vpop.f32.mrf.mxu0
        %987 = vmatprep.mubr.bf16.mxu0 0
        %988 = vmatmul.mubr.bf16.gmra.mxu0 %v445
        %v989 = vpop.f32.mrf.mxu0
        %v990 = vadd.f32 %v906, %v989
        %v991 = vpop.f32.mrf.mxu0
        %v992 = vpop.f32.mrf.mxu0
        %v993 = vadd.f32 %v906, %v992
        %v994 = vpop.f32.mrf.mxu0
        %995 = vmatprep.mubr.bf16.mxu0 0
        %996 = vmatmul.mubr.bf16.gmra.mxu0 %v446
        %v997 = vpop.f32.mrf.mxu0
        %v998 = vadd.f32 %v906, %v997
        %v999 = vpop.f32.mrf.mxu0
        %v1000 = vpop.f32.mrf.mxu0
        %v1001 = vadd.f32 %v906, %v1000
        %v1002 = vpop.f32.mrf.mxu0
        %1003 = vdwg.mxu0
        %v1004 = vmax.f32 %v942, 0.0
        %v1005 = vmax.f32 %v945, 0.0
        %v1006 = vmax.f32 %v950, 0.0
        %v1007 = vmax.f32 %v953, 0.0
        %v1008 = vmax.f32 %v958, 0.0
        %v1009 = vmax.f32 %v961, 0.0
        %v1010 = vmax.f32 %v966, 0.0
        %v1011 = vmax.f32 %v969, 0.0
        %v1012 = vmax.f32 %v974, 0.0
        %v1013 = vmax.f32 %v977, 0.0
        %v1014 = vmax.f32 %v982, 0.0
        %v1015 = vmax.f32 %v985, 0.0
        %v1016 = vmax.f32 %v990, 0.0
        %v1017 = vmax.f32 %v993, 0.0
        %v1018 = vmax.f32 %v998, 0.0
        %v1019 = vmax.f32 %v1001, 0.0
        %s1020 = scalar_lea.vmem %s295, 128 [#allocation7]
        %v1021 = vld [vmem:[%s1020] sm:$0xf]
        %v1022 = vld [vmem:[%s1020 + $0x4] sm:$0xf]
        %v1023 = vld [vmem:[%s1020 + $0x8] sm:$0xf]
        %v1024 = vld [vmem:[%s1020 + $0xc] sm:$0xf]
        %v1025 = vld [vmem:[%s1020 + $0x10] sm:$0xf]
        %v1026 = vld [vmem:[%s1020 + $0x14] sm:$0xf]
        %v1027 = vld [vmem:[%s1020 + $0x18] sm:$0xf]
        %v1028 = vld [vmem:[%s1020 + $0x1c] sm:$0xf]
        %v1029 = vld [vmem:[%s1020 + $0x20] sm:$0xf]
        %v1030 = vld [vmem:[%s1020 + $0x24] sm:$0xf]
        %v1031 = vld [vmem:[%s1020 + $0x28] sm:$0xf]
        %v1032 = vld [vmem:[%s1020 + $0x2c] sm:$0xf]
        %v1033 = vld [vmem:[%s1020 + $0x30] sm:$0xf]
        %v1034 = vld [vmem:[%s1020 + $0x34] sm:$0xf]
        %v1035 = vld [vmem:[%s1020 + $0x38] sm:$0xf]
        %v1036 = vld [vmem:[%s1020 + $0x3c] sm:$0xf]
        %v1037 = vpack.c.bf16 %v1005, %v1004
        %v1038 = vpack.c.bf16 %v1007, %v1006
        %v1039 = vpack.c.bf16 %v1009, %v1008
        %v1040 = vpack.c.bf16 %v1011, %v1010
        %v1041 = vpack.c.bf16 %v1013, %v1012
        %v1042 = vpack.c.bf16 %v1015, %v1014
        %v1043 = vpack.c.bf16 %v1017, %v1016
        %v1044 = vpack.c.bf16 %v1019, %v1018
        %v1061 = vunpack.c.l.b16 %v1021
        %v1062 = vunpack.c.l.b16 %v1022
        %v1063 = vunpack.c.l.b16 %v1023
        %v1064 = vunpack.c.l.b16 %v1024
        %v1065 = vunpack.c.l.b16 %v1025
        %v1066 = vunpack.c.l.b16 %v1026
        %v1067 = vunpack.c.l.b16 %v1027
        %v1068 = vunpack.c.l.b16 %v1028
        %v1069 = vunpack.c.l.b16 %v1029
        %v1070 = vunpack.c.l.b16 %v1030
        %v1071 = vunpack.c.l.b16 %v1031
        %v1072 = vunpack.c.l.b16 %v1032
        %v1073 = vunpack.c.l.b16 %v1033
        %v1074 = vunpack.c.l.b16 %v1034
        %v1075 = vunpack.c.l.b16 %v1035
        %v1076 = vunpack.c.l.b16 %v1036
        %v1077 = vpack.c.b16 %v1062, %v1061
        %v1078 = vpack.c.b16 %v1064, %v1063
        %v1079 = vpack.c.b16 %v1066, %v1065
        %v1080 = vpack.c.b16 %v1068, %v1067
        %v1081 = vpack.c.b16 %v1070, %v1069
        %v1082 = vpack.c.b16 %v1072, %v1071
        %v1083 = vpack.c.b16 %v1074, %v1073
        %v1084 = vpack.c.b16 %v1076, %v1075
        %1093 = vmatprep.subr.bf16.mxu0 0
        %1094 = vmatpush1.bf16.msra.mxu0 %v1084
        %1095 = vmatprep.subr.bf16.mxu0 0
        %1096 = vmatpush1.bf16.msra.mxu0 %v1083
        %1097 = vmatprep.subr.bf16.mxu0 0
        %1098 = vmatpush1.bf16.msra.mxu0 %v1082
        %1099 = vmatprep.subr.bf16.mxu0 0
        %1100 = vmatpush1.bf16.msra.mxu0 %v1081
        %1101 = vmatprep.subr.bf16.mxu0 0
        %1102 = vmatpush1.bf16.msra.mxu0 %v1080
        %1103 = vmatprep.subr.bf16.mxu0 0
        %1104 = vmatpush1.bf16.msra.mxu0 %v1079
        %1105 = vmatprep.subr.bf16.mxu0 0
        %1106 = vmatpush1.bf16.msra.mxu0 %v1078
        %1107 = vmatprep.subr.bf16.mxu0 0
        %1108 = vmatpush1.bf16.msra.mxu0 %v1077
        %1109 = vmatprep.subr.bf16.mxu0 0
        %1110 = vmatpush2.bf16.msra.mxu0 0
        %1111 = vmatprep.subr.bf16.mxu0 0
        %1112 = vmatpush2.bf16.msra.mxu0 0
        %1113 = vmatprep.subr.bf16.mxu0 0
        %1114 = vmatpush2.bf16.msra.mxu0 0
        %1115 = vmatprep.subr.bf16.mxu0 0
        %1116 = vmatpush2.bf16.msra.mxu0 0
        %1117 = vmatprep.subr.bf16.mxu0 0
        %1118 = vmatpush2.bf16.msra.mxu0 0
        %1119 = vmatprep.subr.bf16.mxu0 0
        %1120 = vmatpush2.bf16.msra.mxu0 0
        %1121 = vmatprep.subr.bf16.mxu0 0
        %1122 = vmatpush2.bf16.msra.mxu0 0
        %1123 = vmatprep.subr.bf16.mxu0 0
        %1124 = vmatpush2.bf16.msra.mxu0 0
        %1125 = vmatprep.mubr.bf16.mxu0 0
        %1126 = vmatmul.mubr.bf16.gmra.mxu0 %v1037
        %v1127 = vpop.f32.mrf.mxu0
        %v1128 = vadd.f32 0.0, %v1127
        %v1129 = vpop.f32.mrf.mxu0
        %v1130 = vpop.f32.mrf.mxu0
        %v1131 = vadd.f32 0.0, %v1130
        %v1132 = vpop.f32.mrf.mxu0
        %1133 = vmatprep.mubr.bf16.mxu0 0
        %1134 = vmatmul.mubr.bf16.gmra.mxu0 %v1038
        %v1135 = vpop.f32.mrf.mxu0
        %v1136 = vadd.f32 0.0, %v1135
        %v1137 = vpop.f32.mrf.mxu0
        %v1138 = vpop.f32.mrf.mxu0
        %v1139 = vadd.f32 0.0, %v1138
        %v1140 = vpop.f32.mrf.mxu0
        %1141 = vmatprep.mubr.bf16.mxu0 0
        %1142 = vmatmul.mubr.bf16.gmra.mxu0 %v1039
        %v1143 = vpop.f32.mrf.mxu0
        %v1144 = vadd.f32 0.0, %v1143
        %v1145 = vpop.f32.mrf.mxu0
        %v1146 = vpop.f32.mrf.mxu0
        %v1147 = vadd.f32 0.0, %v1146
        %v1148 = vpop.f32.mrf.mxu0
        %1149 = vmatprep.mubr.bf16.mxu0 0
        %1150 = vmatmul.mubr.bf16.gmra.mxu0 %v1040
        %v1151 = vpop.f32.mrf.mxu0
        %v1152 = vadd.f32 0.0, %v1151
        %v1153 = vpop.f32.mrf.mxu0
        %v1154 = vpop.f32.mrf.mxu0
        %v1155 = vadd.f32 0.0, %v1154
        %v1156 = vpop.f32.mrf.mxu0
        %1157 = vmatprep.mubr.bf16.mxu0 0
        %1158 = vmatmul.mubr.bf16.gmra.mxu0 %v1041
        %v1159 = vpop.f32.mrf.mxu0
        %v1160 = vadd.f32 0.0, %v1159
        %v1161 = vpop.f32.mrf.mxu0
        %v1162 = vpop.f32.mrf.mxu0
        %v1163 = vadd.f32 0.0, %v1162
        %v1164 = vpop.f32.mrf.mxu0
        %1165 = vmatprep.mubr.bf16.mxu0 0
        %1166 = vmatmul.mubr.bf16.gmra.mxu0 %v1042
        %v1167 = vpop.f32.mrf.mxu0
        %v1168 = vadd.f32 0.0, %v1167
        %v1169 = vpop.f32.mrf.mxu0
        %v1170 = vpop.f32.mrf.mxu0
        %v1171 = vadd.f32 0.0, %v1170
        %v1172 = vpop.f32.mrf.mxu0
        %1173 = vmatprep.mubr.bf16.mxu0 0
        %1174 = vmatmul.mubr.bf16.gmra.mxu0 %v1043
        %v1175 = vpop.f32.mrf.mxu0
        %v1176 = vadd.f32 0.0, %v1175
        %v1177 = vpop.f32.mrf.mxu0
        %v1178 = vpop.f32.mrf.mxu0
        %v1179 = vadd.f32 0.0, %v1178
        %v1180 = vpop.f32.mrf.mxu0
        %1181 = vmatprep.mubr.bf16.mxu0 0
        %1182 = vmatmul.mubr.bf16.gmra.mxu0 %v1044
        %v1183 = vpop.f32.mrf.mxu0
        %v1184 = vadd.f32 0.0, %v1183
        %v1185 = vpop.f32.mrf.mxu0
        %v1186 = vpop.f32.mrf.mxu0
        %v1187 = vadd.f32 0.0, %v1186
        %v1188 = vpop.f32.mrf.mxu0
        %1189 = vdwg.mxu0
        %v1190 = vpack.c.bf16 %v1131, %v1128
        %v1191 = vpack.c.bf16 %v1139, %v1136
        %v1192 = vpack.c.bf16 %v1147, %v1144
        %v1193 = vpack.c.bf16 %v1155, %v1152
        %v1194 = vpack.c.bf16 %v1163, %v1160
        %v1195 = vpack.c.bf16 %v1171, %v1168
        %v1196 = vpack.c.bf16 %v1179, %v1176
        %v1197 = vpack.c.bf16 %v1187, %v1184
        %v1198 = vlaneseq
        %v1199 = vshrl.u32 %v1198, 7
        %v1200 = vsub.s32 2, %v1199
        %v1201 = vrot.slane %v382, %v1200
        %1202 = vmatprep.subr.bf16.mxu0 0
        %1203 = vmatpush1.bf16.msra.mxu0 %v1197
        %1204 = vmatprep.subr.bf16.mxu0 0
        %1205 = vmatpush1.bf16.msra.mxu0 %v1196
        %1206 = vmatprep.subr.bf16.mxu0 0
        %1207 = vmatpush1.bf16.msra.mxu0 %v1195
        %1208 = vmatprep.subr.bf16.mxu0 0
        %1209 = vmatpush1.bf16.msra.mxu0 %v1194
        %1210 = vmatprep.subr.bf16.mxu0 0
        %1211 = vmatpush1.bf16.msra.mxu0 %v1193
        %1212 = vmatprep.subr.bf16.mxu0 0
        %1213 = vmatpush1.bf16.msra.mxu0 %v1192
        %1214 = vmatprep.subr.bf16.mxu0 0
        %1215 = vmatpush1.bf16.msra.mxu0 %v1191
        %1216 = vmatprep.subr.bf16.mxu0 0
        %1217 = vmatpush1.bf16.msra.mxu0 %v1190
        %1218 = vmatprep.subr.bf16.mxu0 0
        %1219 = vmatpush2.bf16.msra.mxu0 0
        %1220 = vmatprep.subr.bf16.mxu0 0
        %1221 = vmatpush2.bf16.msra.mxu0 0
        %1222 = vmatprep.subr.bf16.mxu0 0
        %1223 = vmatpush2.bf16.msra.mxu0 0
        %1224 = vmatprep.subr.bf16.mxu0 0
        %1225 = vmatpush2.bf16.msra.mxu0 0
        %1226 = vmatprep.subr.bf16.mxu0 0
        %1227 = vmatpush2.bf16.msra.mxu0 0
        %1228 = vmatprep.subr.bf16.mxu0 0
        %1229 = vmatpush2.bf16.msra.mxu0 0
        %1230 = vmatprep.subr.bf16.mxu0 0
        %1231 = vmatpush2.bf16.msra.mxu0 0
        %1232 = vmatprep.subr.bf16.mxu0 0
        %1233 = vmatpush2.bf16.msra.mxu0 0
        %1234 = vmatprep.mubr.bf16.mxu0 0
        %1235 = vmatmul.mubr.bf16.gmra.mxu0 %v439
        %v1236 = vpop.f32.mrf.mxu0
        %v1237 = vadd.f32 %v1201, %v1236
        %v1238 = vpop.f32.mrf.mxu0
        %v1239 = vpop.f32.mrf.mxu0
        %v1240 = vadd.f32 %v1201, %v1239
        %v1241 = vpop.f32.mrf.mxu0
        %1242 = vmatprep.mubr.bf16.mxu0 0
        %1243 = vmatmul.mubr.bf16.gmra.mxu0 %v440
        %v1244 = vpop.f32.mrf.mxu0
        %v1245 = vadd.f32 %v1201, %v1244
        %v1246 = vpop.f32.mrf.mxu0
        %v1247 = vpop.f32.mrf.mxu0
        %v1248 = vadd.f32 %v1201, %v1247
        %v1249 = vpop.f32.mrf.mxu0
        %1250 = vmatprep.mubr.bf16.mxu0 0
        %1251 = vmatmul.mubr.bf16.gmra.mxu0 %v441
        %v1252 = vpop.f32.mrf.mxu0
        %v1253 = vadd.f32 %v1201, %v1252
        %v1254 = vpop.f32.mrf.mxu0
        %v1255 = vpop.f32.mrf.mxu0
        %v1256 = vadd.f32 %v1201, %v1255
        %v1257 = vpop.f32.mrf.mxu0
        %1258 = vmatprep.mubr.bf16.mxu0 0
        %1259 = vmatmul.mubr.bf16.gmra.mxu0 %v442
        %v1260 = vpop.f32.mrf.mxu0
        %v1261 = vadd.f32 %v1201, %v1260
        %v1262 = vpop.f32.mrf.mxu0
        %v1263 = vpop.f32.mrf.mxu0
        %v1264 = vadd.f32 %v1201, %v1263
        %v1265 = vpop.f32.mrf.mxu0
        %1266 = vmatprep.mubr.bf16.mxu0 0
        %1267 = vmatmul.mubr.bf16.gmra.mxu0 %v443
        %v1268 = vpop.f32.mrf.mxu0
        %v1269 = vadd.f32 %v1201, %v1268
        %v1270 = vpop.f32.mrf.mxu0
        %v1271 = vpop.f32.mrf.mxu0
        %v1272 = vadd.f32 %v1201, %v1271
        %v1273 = vpop.f32.mrf.mxu0
        %1274 = vmatprep.mubr.bf16.mxu0 0
        %1275 = vmatmul.mubr.bf16.gmra.mxu0 %v444
        %v1276 = vpop.f32.mrf.mxu0
        %v1277 = vadd.f32 %v1201, %v1276
        %v1278 = vpop.f32.mrf.mxu0
        %v1279 = vpop.f32.mrf.mxu0
        %v1280 = vadd.f32 %v1201, %v1279
        %v1281 = vpop.f32.mrf.mxu0
        %1282 = vmatprep.mubr.bf16.mxu0 0
        %1283 = vmatmul.mubr.bf16.gmra.mxu0 %v445
        %v1284 = vpop.f32.mrf.mxu0
        %v1285 = vadd.f32 %v1201, %v1284
        %v1286 = vpop.f32.mrf.mxu0
        %v1287 = vpop.f32.mrf.mxu0
        %v1288 = vadd.f32 %v1201, %v1287
        %v1289 = vpop.f32.mrf.mxu0
        %1290 = vmatprep.mubr.bf16.mxu0 0
        %1291 = vmatmul.mubr.bf16.gmra.mxu0 %v446
        %v1292 = vpop.f32.mrf.mxu0
        %v1293 = vadd.f32 %v1201, %v1292
        %v1294 = vpop.f32.mrf.mxu0
        %v1295 = vpop.f32.mrf.mxu0
        %v1296 = vadd.f32 %v1201, %v1295
        %v1297 = vpop.f32.mrf.mxu0
        %1298 = vdwg.mxu0
        %v1299 = vpack.c.bf16 %v1240, %v1237
        %v1300 = vpack.c.bf16 %v1248, %v1245
        %v1301 = vpack.c.bf16 %v1256, %v1253
        %v1302 = vpack.c.bf16 %v1264, %v1261
        %v1303 = vpack.c.bf16 %v1272, %v1269
        %v1304 = vpack.c.bf16 %v1280, %v1277
        %v1305 = vpack.c.bf16 %v1288, %v1285
        %v1306 = vpack.c.bf16 %v1296, %v1293
        %v1307 = vld [vmem:[%s304] sm:$0xf]
        %v1308 = vld [vmem:[%s304 + $0x4] sm:$0xf]
        %v1309 = vld [vmem:[%s304 + $0x8] sm:$0xf]
        %v1310 = vld [vmem:[%s304 + $0xc] sm:$0xf]
        %v1311 = vld [vmem:[%s304 + $0x10] sm:$0xf]
        %v1312 = vld [vmem:[%s304 + $0x14] sm:$0xf]
        %v1313 = vld [vmem:[%s304 + $0x18] sm:$0xf]
        %v1314 = vld [vmem:[%s304 + $0x1c] sm:$0xf]
        %v1315 = vld [vmem:[%s304 + $0x20] sm:$0xf]
        %v1316 = vld [vmem:[%s304 + $0x24] sm:$0xf]
        %v1317 = vld [vmem:[%s304 + $0x28] sm:$0xf]
        %v1318 = vld [vmem:[%s304 + $0x2c] sm:$0xf]
        %v1319 = vld [vmem:[%s304 + $0x30] sm:$0xf]
        %v1320 = vld [vmem:[%s304 + $0x34] sm:$0xf]
        %v1321 = vld [vmem:[%s304 + $0x38] sm:$0xf]
        %v1322 = vld [vmem:[%s304 + $0x3c] sm:$0xf]
        %v1339 = vunpack.c.l.b16 %v1307
        %v1340 = vunpack.c.l.b16 %v1308
        %v1341 = vunpack.c.l.b16 %v1309
        %v1342 = vunpack.c.l.b16 %v1310
        %v1343 = vunpack.c.l.b16 %v1311
        %v1344 = vunpack.c.l.b16 %v1312
        %v1345 = vunpack.c.l.b16 %v1313
        %v1346 = vunpack.c.l.b16 %v1314
        %v1347 = vunpack.c.l.b16 %v1315
        %v1348 = vunpack.c.l.b16 %v1316
        %v1349 = vunpack.c.l.b16 %v1317
        %v1350 = vunpack.c.l.b16 %v1318
        %v1351 = vunpack.c.l.b16 %v1319
        %v1352 = vunpack.c.l.b16 %v1320
        %v1353 = vunpack.c.l.b16 %v1321
        %v1354 = vunpack.c.l.b16 %v1322
        %v1355 = vpack.c.b16 %v1340, %v1339
        %v1356 = vpack.c.b16 %v1342, %v1341
        %v1357 = vpack.c.b16 %v1344, %v1343
        %v1358 = vpack.c.b16 %v1346, %v1345
        %v1359 = vpack.c.b16 %v1348, %v1347
        %v1360 = vpack.c.b16 %v1350, %v1349
        %v1361 = vpack.c.b16 %v1352, %v1351
        %v1362 = vpack.c.b16 %v1354, %v1353
        %1371 = vmatprep.subr.bf16.mxu0 0
        %1372 = vmatpush1.bf16.msra.mxu0 %v1362
        %1373 = vmatprep.subr.bf16.mxu0 0
        %1374 = vmatpush1.bf16.msra.mxu0 %v1361
        %1375 = vmatprep.subr.bf16.mxu0 0
        %1376 = vmatpush1.bf16.msra.mxu0 %v1360
        %1377 = vmatprep.subr.bf16.mxu0 0
        %1378 = vmatpush1.bf16.msra.mxu0 %v1359
        %1379 = vmatprep.subr.bf16.mxu0 0
        %1380 = vmatpush1.bf16.msra.mxu0 %v1358
        %1381 = vmatprep.subr.bf16.mxu0 0
        %1382 = vmatpush1.bf16.msra.mxu0 %v1357
        %1383 = vmatprep.subr.bf16.mxu0 0
        %1384 = vmatpush1.bf16.msra.mxu0 %v1356
        %1385 = vmatprep.subr.bf16.mxu0 0
        %1386 = vmatpush1.bf16.msra.mxu0 %v1355
        %1387 = vmatprep.subr.bf16.mxu0 0
        %1388 = vmatpush2.bf16.msra.mxu0 0
        %1389 = vmatprep.subr.bf16.mxu0 0
        %1390 = vmatpush2.bf16.msra.mxu0 0
        %1391 = vmatprep.subr.bf16.mxu0 0
        %1392 = vmatpush2.bf16.msra.mxu0 0
        %1393 = vmatprep.subr.bf16.mxu0 0
        %1394 = vmatpush2.bf16.msra.mxu0 0
        %1395 = vmatprep.subr.bf16.mxu0 0
        %1396 = vmatpush2.bf16.msra.mxu0 0
        %1397 = vmatprep.subr.bf16.mxu0 0
        %1398 = vmatpush2.bf16.msra.mxu0 0
        %1399 = vmatprep.subr.bf16.mxu0 0
        %1400 = vmatpush2.bf16.msra.mxu0 0
        %1401 = vmatprep.subr.bf16.mxu0 0
        %1402 = vmatpush2.bf16.msra.mxu0 0
        %1403 = vmatprep.mubr.bf16.mxu0 0
        %1404 = vmatmul.mubr.bf16.gmra.mxu0 %v1299
        %v1405 = vpop.f32.mrf.mxu0
        %v1406 = vadd.f32 0.0, %v1405
        %v1407 = vpop.f32.mrf.mxu0
        %v1408 = vpop.f32.mrf.mxu0
        %v1409 = vadd.f32 0.0, %v1408
        %v1410 = vpop.f32.mrf.mxu0
        %1411 = vmatprep.mubr.bf16.mxu0 0
        %1412 = vmatmul.mubr.bf16.gmra.mxu0 %v1300
        %v1413 = vpop.f32.mrf.mxu0
        %v1414 = vadd.f32 0.0, %v1413
        %v1415 = vpop.f32.mrf.mxu0
        %v1416 = vpop.f32.mrf.mxu0
        %v1417 = vadd.f32 0.0, %v1416
        %v1418 = vpop.f32.mrf.mxu0
        %1419 = vmatprep.mubr.bf16.mxu0 0
        %1420 = vmatmul.mubr.bf16.gmra.mxu0 %v1301
        %v1421 = vpop.f32.mrf.mxu0
        %v1422 = vadd.f32 0.0, %v1421
        %v1423 = vpop.f32.mrf.mxu0
        %v1424 = vpop.f32.mrf.mxu0
        %v1425 = vadd.f32 0.0, %v1424
        %v1426 = vpop.f32.mrf.mxu0
        %1427 = vmatprep.mubr.bf16.mxu0 0
        %1428 = vmatmul.mubr.bf16.gmra.mxu0 %v1302
        %v1429 = vpop.f32.mrf.mxu0
        %v1430 = vadd.f32 0.0, %v1429
        %v1431 = vpop.f32.mrf.mxu0
        %v1432 = vpop.f32.mrf.mxu0
        %v1433 = vadd.f32 0.0, %v1432
        %v1434 = vpop.f32.mrf.mxu0
        %1435 = vmatprep.mubr.bf16.mxu0 0
        %1436 = vmatmul.mubr.bf16.gmra.mxu0 %v1303
        %v1437 = vpop.f32.mrf.mxu0
        %v1438 = vadd.f32 0.0, %v1437
        %v1439 = vpop.f32.mrf.mxu0
        %v1440 = vpop.f32.mrf.mxu0
        %v1441 = vadd.f32 0.0, %v1440
        %v1442 = vpop.f32.mrf.mxu0
        %1443 = vmatprep.mubr.bf16.mxu0 0
        %1444 = vmatmul.mubr.bf16.gmra.mxu0 %v1304
        %v1445 = vpop.f32.mrf.mxu0
        %v1446 = vadd.f32 0.0, %v1445
        %v1447 = vpop.f32.mrf.mxu0
        %v1448 = vpop.f32.mrf.mxu0
        %v1449 = vadd.f32 0.0, %v1448
        %v1450 = vpop.f32.mrf.mxu0
        %1451 = vmatprep.mubr.bf16.mxu0 0
        %1452 = vmatmul.mubr.bf16.gmra.mxu0 %v1305
        %v1453 = vpop.f32.mrf.mxu0
        %v1454 = vadd.f32 0.0, %v1453
        %v1455 = vpop.f32.mrf.mxu0
        %v1456 = vpop.f32.mrf.mxu0
        %v1457 = vadd.f32 0.0, %v1456
        %v1458 = vpop.f32.mrf.mxu0
        %1459 = vmatprep.mubr.bf16.mxu0 0
        %1460 = vmatmul.mubr.bf16.gmra.mxu0 %v1306
        %v1461 = vpop.f32.mrf.mxu0
        %v1462 = vadd.f32 0.0, %v1461
        %v1463 = vpop.f32.mrf.mxu0
        %v1464 = vpop.f32.mrf.mxu0
        %v1465 = vadd.f32 0.0, %v1464
        %v1466 = vpop.f32.mrf.mxu0
        %1467 = vdwg.mxu0
        %1468 = vst [vmem:[%s344] sm:$0xff] %v1406
        %1469 = vst [vmem:[%s344 + $0x8] sm:$0xff] %v1409
        %1470 = vst [vmem:[%s344 + $0x10] sm:$0xff] %v1414
        %1471 = vst [vmem:[%s344 + $0x18] sm:$0xff] %v1417
        %1472 = vst [vmem:[%s344 + $0x20] sm:$0xff] %v1422
        %1473 = vst [vmem:[%s344 + $0x28] sm:$0xff] %v1425
        %1474 = vst [vmem:[%s344 + $0x30] sm:$0xff] %v1430
        %1475 = vst [vmem:[%s344 + $0x38] sm:$0xff] %v1433
        %1476 = vst [vmem:[%s344 + $0x40] sm:$0xff] %v1438
        %1477 = vst [vmem:[%s344 + $0x48] sm:$0xff] %v1441
        %1478 = vst [vmem:[%s344 + $0x50] sm:$0xff] %v1446
        %1479 = vst [vmem:[%s344 + $0x58] sm:$0xff] %v1449
        %1480 = vst [vmem:[%s344 + $0x60] sm:$0xff] %v1454
        %1481 = vst [vmem:[%s344 + $0x68] sm:$0xff] %v1457
        %1482 = vst [vmem:[%s344 + $0x70] sm:$0xff] %v1462
        %1483 = vst [vmem:[%s344 + $0x78] sm:$0xff] %v1465
        %s1484 = sand.u32 %s156, 1
        %s1485 = scalar_lea.sflag [#allocation4], %s1484
        %s1486 = sand.u32 %s156, 1
        %s1487 = smul.addr %s1486, 128
        %s1488 = scalar_lea.vmem [#allocation9], %s1487
        // Predicated region
        $region57: #{tpu_custom_call.1} parent=39 // pred_check
          %p1489 = pneg %p166
        $region58: #{tpu_custom_call.1} parent=39 // pred_check_branch
          %1491 = sbr.rel (%p1489) target = $region60
        $region59: #{tpu_custom_call.1} parent=39 // pred_region
          %s1493 = ssub.s32 2048, 2048
          %1494 = vsyncadd %s1485, %s1493
          %s1495 = smul.addr %s23, 16
          %s1496 = smul.addr %s1495, 128
          %s1497 = scalar_lea.hbm %s5, %s1496
          %s1498 = sshll.u32 %s1488, 4
          %s1499 = int_to_ptr.vmem [resolvable:$true] %s1498
          %1504 = dma.vmem_to_hbm [thread:$0]  %s1499, 2048, %s1497, %s1485, 128, 128, 8
        $region60: #{tpu_custom_call.1} parent=39 // pred_fallthru
          _
      $region40: #{tpu_custom_call.1} parent=5 // pred_fallthru
        _
      %p1505 = scmp.le.s32.totalorder 2, %s18
      // Predicated region
      $region61: #{tpu_custom_call.1} parent=5 // pred_check
        %p1506 = pneg %p1505
      $region62: #{tpu_custom_call.1} parent=5 // pred_check_branch
        %1508 = sbr.rel (%p1506) target = $region64
      $region63: #{tpu_custom_call.1} parent=5 // pred_region
        %s1509 = ssub.s32 %s18, 2
        // Predicated region
        $region65: #{tpu_custom_call.1} parent=63 // pred_check
          %p1510 = pneg %p172
        $region66: #{tpu_custom_call.1} parent=63 // pred_check_branch
          %1512 = sbr.rel (%p1510) target = $region68
        $region67: #{tpu_custom_call.1} parent=63 // pred_region
          %s1513 = sand.u32 %s157, 1
          %s1514 = scalar_lea.sflag [#allocation4], %s1513
          %s1515 = sand.u32 %s157, 1
          %s1516 = smul.addr %s1515, 128
          %s1517 = scalar_lea.vmem [#allocation9], %s1516
          %1518 = dma.done %s1514, 2048
        $region68: #{tpu_custom_call.1} parent=63 // pred_fallthru
          _
      $region64: #{tpu_custom_call.1} parent=5 // pred_fallthru
        _
    $region6: #{tpu_custom_call.1} parent=1 // loop_footer
      %s22 = sadd.s32 1, %s18
    $region7: #{tpu_custom_call.1} parent=1 // loop_footer_branch
      %17 = sbr.rel target = $region3
    $region8: #{tpu_custom_call.1} parent=1 // loop_exit
      _
    %1519 = vsyncpa [#allocation3], 1
    %s1520 = scalar_lea.sflag [#allocation3], 1
    %1521 = vsyncpa %s1520, 1
    %1522 = vsyncpa [#allocation6], 1
    %1523 = vsyncpa [#allocation4], 1
    %s1524 = scalar_lea.sflag [#allocation4], 1
    %1525 = vsyncpa %s1524, 1

</llo_original>
